<compile_context>
chip_gen: v7x
topology: tpu7x:2x2x1
jax: 0.10.0
libtpu: 0.0.40
codegen_flags: <defaults>
</compile_context>

<pallas_src>
import jax
import jax.numpy as jnp
from jax.experimental import pallas as pl
from jax.experimental.pallas import tpu as pltpu

FEAT_DIM = 512    # classifier input dim (Linear(512, num_dim))
NUM_DIM = 64      # classifier output dim
NUM_PAD = 128     # classifier output padded to a full lane tile


def patchnet_kernel(x_ref, wconvT_ref, wclsT_ref, bcls_ref, o_ref):
    # x_ref:      (TB, C+1, HW)       bf16  channels-first + ones channel, lanes = HW
    # wconvT_ref: (FEAT_DIM, C+1)     bf16  1x1-conv weight (transposed), bias folded in
    # wclsT_ref:  (FEAT_DIM, 128)     bf16  classifier W.T, zero-padded cols, 1/HW folded in
    # bcls_ref:   (1, 128)            f32   classifier bias, zero-padded
    # o_ref:      (TB, 128)           f32
    x = x_ref[...]                                               # (TB, C+1, HW) bf16
    tb = x.shape[0]

    # "features": 1x1 conv (+ folded bias) == batched MXU matmul with f32 accumulation.
    # lhs has the contracting dim last, rhs has it second-to-last -> no data transposes.
    w = jnp.broadcast_to(wconvT_ref[...], (tb,) + tuple(wconvT_ref.shape))  # (TB, FEAT, C+1)
    h = jnp.einsum("bfc,bch->bfh", w, x,
                   preferred_element_type=jnp.float32)           # (TB, FEAT, HW) f32
    h = jnp.maximum(h, 0.0)                                      # ReLU (bias already folded)

    # global average pool over HW (lane-axis reduction on the XLU); the 1/HW scale is
    # folded into wclsT in the wrapper, so a plain sum suffices here.
    f = jnp.sum(h, axis=-1)                                      # (TB, FEAT) f32

    # classifier: lane-dense (TB, 128) output slab from one MXU matmul.
    y = jnp.dot(f.astype(jnp.bfloat16), wclsT_ref[...],
                preferred_element_type=jnp.float32)              # (TB, 128) f32
    o_ref[...] = (y + bcls_ref[...]).astype(o_ref.dtype)


def _pick_tb(batch, hw):
    """Batch tile: whole batch when it fits; else a multiple of 8 (output block rule),
    keeping the f32 (TB, FEAT, HW) ReLU intermediate under ~8 MiB."""
    budget_bytes = 8 * 1024 * 1024
    cap = max(1, budget_bytes // (FEAT_DIM * hw * 4))
    if batch <= cap:
        return batch
    tb = (cap // 8) * 8
    while tb >= 8 and batch % tb:
        tb -= 8
    return tb if (tb >= 8 and batch % tb == 0) else batch


def patchnet_forward(x_nchw, wconv, bconv, wcls, bcls):
    """x_nchw: (B, C, H, W) float32. wconv: (C, 512), bconv: (512,),
    wcls: (NUM_DIM, 512), bcls: (NUM_DIM,). Returns (B, NUM_DIM) float32."""
    B, C, H, W = x_nchw.shape
    HW = H * W
    TB = _pick_tb(B, HW)
    NB = B // TB
    assert NB * TB == B

    # Channels-first: NCHW is already channel-major, so this is just a reshape.
    # Append a ones channel so the conv bias folds into the matmul (XLA fuses the
    # cast + concat into one pass over x).  bf16 halves DMA and feeds the MXU natively.
    x = x_nchw.reshape(B, C, HW)
    x_aug = jnp.concatenate(
        [x, jnp.ones((B, 1, HW), x.dtype)], axis=1).astype(jnp.bfloat16)      # (B, C+1, HW)

    wconvT = jnp.concatenate(
        [jnp.transpose(wconv), bconv[:, None]], axis=1).astype(jnp.bfloat16)  # (FEAT, C+1)
    # classifier: fold the 1/HW pooling scale into W.T, pad outputs 64 -> 128 lanes.
    wclsT = jnp.pad(wcls.T / HW, ((0, 0), (0, NUM_PAD - NUM_DIM))).astype(jnp.bfloat16)
    bclsp = jnp.pad(bcls, (0, NUM_PAD - NUM_DIM)).reshape(1, NUM_PAD).astype(jnp.float32)

    flops = (2 * B * HW * (C + 1) * FEAT_DIM      # conv matmul
             + 2 * B * FEAT_DIM * HW              # relu + pool sum
             + 2 * B * FEAT_DIM * NUM_PAD)        # classifier matmul
    bytes_accessed = int(sum(a.size * a.dtype.itemsize
                             for a in (x_aug, wconvT, wclsT, bclsp))
                         + B * NUM_PAD * 4)
    cost = pl.CostEstimate(flops=flops, transcendentals=0,
                           bytes_accessed=bytes_accessed)

    out = pl.pallas_call(
        patchnet_kernel,
        out_shape=jax.ShapeDtypeStruct((B, NUM_PAD), jnp.float32),
        grid_spec=pltpu.PrefetchScalarGridSpec(
            num_scalar_prefetch=0,
            grid=(NB,),
            in_specs=[
                pl.BlockSpec((TB, C + 1, HW), lambda i: (i, 0, 0)),
                pl.BlockSpec((FEAT_DIM, C + 1), lambda i: (0, 0)),
                pl.BlockSpec((FEAT_DIM, NUM_PAD), lambda i: (0, 0)),
                pl.BlockSpec((1, NUM_PAD), lambda i: (0, 0)),
            ],
            out_specs=pl.BlockSpec((TB, NUM_PAD), lambda i: (i, 0)),
        ),
        compiler_params=pltpu.CompilerParams(
            dimension_semantics=("parallel",),
            vmem_limit_bytes=32 * 1024 * 1024),
        cost_estimate=cost,
    )(x_aug, wconvT, wclsT, bclsp)

    return out[:, :NUM_DIM]


def reference_forward(x_nchw, wconv, bconv, wcls, bcls):
    """Plain-JAX f32 reference for correctness check (module semantics)."""
    B, C, H, W = x_nchw.shape
    x = x_nchw.reshape(B, C, H * W)                                      # (B, C, HW)
    h = jnp.maximum(jnp.einsum("cf,bch->bfh", wconv, x) + bconv[None, :, None], 0.0)
    f = jnp.mean(h, axis=-1)                                             # (B, 512)
    return f @ wcls.T + bcls[None, :]                                    # (B, NUM_DIM)


if __name__ == "__main__":
    key = jax.random.PRNGKey(0)
    k_x, k_wc, k_bc, k_wl, k_bl = jax.random.split(key, 5)

    B, C, H, W = 2, 4, 16, 16
    x = jax.random.normal(k_x, (B, C, H, W), dtype=jnp.float32)

    # deterministic parameter init (synthetic, no checkpoint load)
    wconv = jax.random.normal(k_wc, (C, FEAT_DIM), dtype=jnp.float32) * 0.1
    bconv = jax.random.normal(k_bc, (FEAT_DIM,), dtype=jnp.float32) * 0.01
    wcls = jax.random.normal(k_wl, (NUM_DIM, FEAT_DIM), dtype=jnp.float32) * 0.05
    bcls = jax.random.normal(k_bl, (NUM_DIM,), dtype=jnp.float32) * 0.01

    y = patchnet_forward(x, wconv, bconv, wcls, bcls)
    jax.block_until_ready(y)

    y_ref = reference_forward(x, wconv, bconv, wcls, bcls)
    assert y.shape == (B, NUM_DIM)
    # bf16 matmul inputs with f32 accumulation -> compare to f32 reference at bf16 tolerance.
    assert jnp.allclose(y, y_ref, atol=2e-2, rtol=2e-2), "mismatch vs reference"

    print("KERNEL_OK")
</pallas_src>

<mosaic_0001>
module attributes {stable_mosaic.version = 11 : i64} {
  func.func @patchnet_kernel(%arg0: i32, %arg1: memref<2x5x256xbf16, #tpu.memory_space<vmem>>, %arg2: memref<512x5xbf16, #tpu.memory_space<vmem>>, %arg3: memref<512x128xbf16, #tpu.memory_space<vmem>>, %arg4: memref<1x128xf32, #tpu.memory_space<vmem>>, %arg5: memref<2x128xf32, #tpu.memory_space<vmem>>) attributes {dimension_semantics = [#tpu.dimension_semantics<parallel>], iteration_bounds = array<i64: 1>, scalar_prefetch = 0 : i64, scratch_operands = 0 : i64, tpu.core_type = #tpu.core_type<tc>, window_params = [{transform_indices = @transform_0, window_bounds = array<i64: 2, 5, 256>}, {pipeline_mode = #tpu.pipeline_mode<synchronous>, transform_indices = @transform_1, window_bounds = array<i64: 512, 5>}, {pipeline_mode = #tpu.pipeline_mode<synchronous>, transform_indices = @transform_2, window_bounds = array<i64: 512, 128>}, {pipeline_mode = #tpu.pipeline_mode<synchronous>, transform_indices = @transform_3, window_bounds = array<i64: 1, 128>}, {transform_indices = @transform_4, window_bounds = array<i64: 2, 128>}]} {
    %c0 = arith.constant 0 : index
    %c0_0 = arith.constant 0 : index
    %c0_1 = arith.constant 0 : index
    %0 = vector.load %arg1[%c0, %c0_0, %c0_1] : memref<2x5x256xbf16, #tpu.memory_space<vmem>>, vector<2x5x256xbf16>
    %c0_2 = arith.constant 0 : index
    %c0_3 = arith.constant 0 : index
    %1 = vector.load %arg2[%c0_2, %c0_3] : memref<512x5xbf16, #tpu.memory_space<vmem>>, vector<512x5xbf16>
    %2 = vector.shape_cast %1 : vector<512x5xbf16> to vector<1x512x5xbf16>
    %3 = vector.broadcast %2 : vector<1x512x5xbf16> to vector<2x512x5xbf16>
    "tpu.trace_start"() <{level = 10 : i32, message = "bfc,bch->bfh"}> : () -> ()
    %cst = arith.constant dense<0.000000e+00> : vector<2x512x256xf32>
    %4 = tpu.matmul %3, %0, %cst {dimension_numbers = #tpu.dot_dimension_numbers<[2], [1], [1], [2], [0, 0, 0, 1, 1, 2], [0], [0]>} : vector<2x512x5xbf16>, vector<2x5x256xbf16>, vector<2x512x256xf32> -> vector<2x512x256xf32>
    "tpu.trace_stop"() : () -> ()
    %cst_4 = arith.constant 0.000000e+00 : f32
    %5 = vector.broadcast %cst_4 : f32 to vector<2x512x256xf32>
    %6 = arith.maximumf %4, %5 : vector<2x512x256xf32>
    %cst_5 = arith.constant dense<0.000000e+00> : vector<2x512xf32>
    %7 = vector.multi_reduction <add>, %6, %cst_5 [2] : vector<2x512x256xf32> to vector<2x512xf32>
    %8 = arith.truncf %7 : vector<2x512xf32> to vector<2x512xbf16>
    %c0_6 = arith.constant 0 : index
    %c0_7 = arith.constant 0 : index
    %9 = vector.load %arg3[%c0_6, %c0_7] : memref<512x128xbf16, #tpu.memory_space<vmem>>, vector<512x128xbf16>
    %cst_8 = arith.constant dense<0.000000e+00> : vector<2x128xf32>
    %10 = tpu.matmul %8, %9, %cst_8 {dimension_numbers = #tpu.dot_dimension_numbers<[1], [0], [0], [1], [0, 0, 1, 1], [], []>} : vector<2x512xbf16>, vector<512x128xbf16>, vector<2x128xf32> -> vector<2x128xf32>
    %c0_9 = arith.constant 0 : index
    %c0_10 = arith.constant 0 : index
    %11 = vector.load %arg4[%c0_9, %c0_10] : memref<1x128xf32, #tpu.memory_space<vmem>>, vector<1x128xf32>
    %12 = vector.broadcast %11 : vector<1x128xf32> to vector<2x128xf32>
    %13 = arith.addf %10, %12 : vector<2x128xf32>
    %c0_11 = arith.constant 0 : index
    %c0_12 = arith.constant 0 : index
    %14 = vector.load %arg5[%c0_11, %c0_12] : memref<2x128xf32, #tpu.memory_space<vmem>>, vector<2x128xf32>
    tpu.vector_store %arg5[%c0_11, %c0_12], %13 {strides = array<i32>} : memref<2x128xf32, #tpu.memory_space<vmem>>, vector<2x128xf32>,
    return
  }
  func.func @transform_0(%arg0: i32) -> (i32, i32, i32) {
    %c0_i32 = arith.constant 0 : i32
    %c0_i32_0 = arith.constant 0 : i32
    %c0_i32_1 = arith.constant 0 : i32
    return %arg0, %c0_i32, %c0_i32_0 : i32, i32, i32
  }
  func.func @transform_1(%arg0: i32) -> (i32, i32) {
    %c0_i32 = arith.constant 0 : i32
    %c0_i32_0 = arith.constant 0 : i32
    %c0_i32_1 = arith.constant 0 : i32
    return %c0_i32, %c0_i32_0 : i32, i32
  }
  func.func @transform_2(%arg0: i32) -> (i32, i32) {
    %c0_i32 = arith.constant 0 : i32
    %c0_i32_0 = arith.constant 0 : i32
    %c0_i32_1 = arith.constant 0 : i32
    return %c0_i32, %c0_i32_0 : i32, i32
  }
  func.func @transform_3(%arg0: i32) -> (i32, i32) {
    %c0_i32 = arith.constant 0 : i32
    %c0_i32_0 = arith.constant 0 : i32
    %c0_i32_1 = arith.constant 0 : i32
    return %c0_i32, %c0_i32_0 : i32, i32
  }
  func.func @transform_4(%arg0: i32) -> (i32, i32) {
    %c0_i32 = arith.constant 0 : i32
    %c0_i32_0 = arith.constant 0 : i32
    return %arg0, %c0_i32 : i32, i32
  }
}

</mosaic_0001>

<llo_original>
// kernel: tpu_custom_call.1
$region0: #{tpu_custom_call.1}
  #allocation0 [shape = 'u32[]', space=smem, size = 0x4, offset = 0x4, fixed_abs, tag = 'smem constant byte address 0x4 - core index']
  #allocation1 [shape = 'u32[144,128]{1,0:T(1,128)}', space=vmem, size = 0x12000, scoped, tag = 'internal scratch']
  %s0 = inlined_call_operand.vmem [shape: bf16[2,5,256], index: 0, kind: input, shape index: {}]
  %s1 = inlined_call_operand.vmem [shape: bf16[512,5], index: 1, kind: input, shape index: {}]
  %s2 = inlined_call_operand.vmem [shape: bf16[512,128], index: 2, kind: input, shape index: {}]
  %s3 = inlined_call_operand.vmem [shape: f32[1,128], index: 3, kind: input, shape index: {}]
  %s4 = inlined_call_operand.hbm [shape: f32[2,128], index: 4, kind: output, shape index: {}]
  %s5 = sld [smem:[#allocation0]]
  $region26: #{tpu_custom_call.1} parent=0
    _
  %s7 = ssub.s32 1, %s5
  %s8 = scalar_select 0, %s7, %s5
  $region1: #{tpu_custom_call.1} parent=0
    #allocation2 [shape = 'u8[1024]{0}', space=vmem, size = 0x400, scoped, tag = 'output window, operand 0, single buffered']
    #allocation3 [shape = 's32[1]{0}', space=sflag, size = 0x4, scoped, tag = 'scoped memory for tpu_custom_call.1']
    %9 = vsyncpa [#allocation3], 0
    // Predicated region
    $region2: #{tpu_custom_call.1} parent=1 // pred_check
      _
    $region3: #{tpu_custom_call.1} parent=1 // pred_check_branch
      %11 = sbr.rel (0) target = $region5
    $region4: #{tpu_custom_call.1} parent=1 // pred_region
      _
    $region5: #{tpu_custom_call.1} parent=1 // pred_fallthru
      _
    // Predicated region
    $region6: #{tpu_custom_call.1} parent=1 // pred_check
      _
    $region7: #{tpu_custom_call.1} parent=1 // pred_check_branch
      %13 = sbr.rel (0) target = $region9
    $region8: #{tpu_custom_call.1} parent=1 // pred_region
      _
    $region9: #{tpu_custom_call.1} parent=1 // pred_fallthru
      _
    // Predicated region
    $region10: #{tpu_custom_call.1} parent=1 // pred_check
      _
    $region11: #{tpu_custom_call.1} parent=1 // pred_check_branch
      %15 = sbr.rel (0) target = $region13
    $region12: #{tpu_custom_call.1} parent=1 // pred_region
      _
    $region13: #{tpu_custom_call.1} parent=1 // pred_fallthru
      _
    // Predicated region
    $region14: #{tpu_custom_call.1} parent=1 // pred_check
      _
    $region15: #{tpu_custom_call.1} parent=1 // pred_check_branch
      %17 = sbr.rel (0) target = $region17
    $region16: #{tpu_custom_call.1} parent=1 // pred_region
      _
    $region17: #{tpu_custom_call.1} parent=1 // pred_fallthru
      _
    %v19 = vld [vmem:[%s0] sm:$0x77]
    %v20 = vld [vmem:[%s0 + $0x8] sm:$0x77]
    %v21 = vld [vmem:[%s1] sm:$0xf]
    %v22 = vld [vmem:[%s1 + $0x4] sm:$0xf]
    %v23 = vld [vmem:[%s1 + $0x8] sm:$0xf]
    %v24 = vld [vmem:[%s1 + $0xc] sm:$0xf]
    %v25 = vld [vmem:[%s1 + $0x10] sm:$0xf]
    %v26 = vld [vmem:[%s1 + $0x14] sm:$0xf]
    %v27 = vld [vmem:[%s1 + $0x18] sm:$0xf]
    %v28 = vld [vmem:[%s1 + $0x1c] sm:$0xf]
    %v29 = vld [vmem:[%s1 + $0x20] sm:$0xf]
    %v30 = vld [vmem:[%s1 + $0x24] sm:$0xf]
    %v31 = vld [vmem:[%s1 + $0x28] sm:$0xf]
    %v32 = vld [vmem:[%s1 + $0x2c] sm:$0xf]
    %v33 = vld [vmem:[%s1 + $0x30] sm:$0xf]
    %v34 = vld [vmem:[%s1 + $0x34] sm:$0xf]
    %v35 = vld [vmem:[%s1 + $0x38] sm:$0xf]
    %v36 = vld [vmem:[%s1 + $0x3c] sm:$0xf]
    %v37 = vld [vmem:[%s1 + $0x40] sm:$0xf]
    %v38 = vld [vmem:[%s1 + $0x44] sm:$0xf]
    %v39 = vld [vmem:[%s1 + $0x48] sm:$0xf]
    %v40 = vld [vmem:[%s1 + $0x4c] sm:$0xf]
    %v41 = vld [vmem:[%s1 + $0x50] sm:$0xf]
    %v42 = vld [vmem:[%s1 + $0x54] sm:$0xf]
    %v43 = vld [vmem:[%s1 + $0x58] sm:$0xf]
    %v44 = vld [vmem:[%s1 + $0x5c] sm:$0xf]
    %v45 = vld [vmem:[%s1 + $0x60] sm:$0xf]
    %v46 = vld [vmem:[%s1 + $0x64] sm:$0xf]
    %v47 = vld [vmem:[%s1 + $0x68] sm:$0xf]
    %v48 = vld [vmem:[%s1 + $0x6c] sm:$0xf]
    %v49 = vld [vmem:[%s1 + $0x70] sm:$0xf]
    %v50 = vld [vmem:[%s1 + $0x74] sm:$0xf]
    %v51 = vld [vmem:[%s1 + $0x78] sm:$0xf]
    %v52 = vld [vmem:[%s1 + $0x7c] sm:$0xf]
    %v53 = vld [vmem:[%s1 + $0x80] sm:$0xf]
    %v54 = vld [vmem:[%s1 + $0x84] sm:$0xf]
    %v55 = vld [vmem:[%s1 + $0x88] sm:$0xf]
    %v56 = vld [vmem:[%s1 + $0x8c] sm:$0xf]
    %v57 = vld [vmem:[%s1 + $0x90] sm:$0xf]
    %v58 = vld [vmem:[%s1 + $0x94] sm:$0xf]
    %v59 = vld [vmem:[%s1 + $0x98] sm:$0xf]
    %v60 = vld [vmem:[%s1 + $0x9c] sm:$0xf]
    %v61 = vld [vmem:[%s1 + $0xa0] sm:$0xf]
    %v62 = vld [vmem:[%s1 + $0xa4] sm:$0xf]
    %v63 = vld [vmem:[%s1 + $0xa8] sm:$0xf]
    %v64 = vld [vmem:[%s1 + $0xac] sm:$0xf]
    %v65 = vld [vmem:[%s1 + $0xb0] sm:$0xf]
    %v66 = vld [vmem:[%s1 + $0xb4] sm:$0xf]
    %v67 = vld [vmem:[%s1 + $0xb8] sm:$0xf]
    %v68 = vld [vmem:[%s1 + $0xbc] sm:$0xf]
    %v69 = vld [vmem:[%s1 + $0xc0] sm:$0xf]
    %v70 = vld [vmem:[%s1 + $0xc4] sm:$0xf]
    %v71 = vld [vmem:[%s1 + $0xc8] sm:$0xf]
    %v72 = vld [vmem:[%s1 + $0xcc] sm:$0xf]
    %v73 = vld [vmem:[%s1 + $0xd0] sm:$0xf]
    %v74 = vld [vmem:[%s1 + $0xd4] sm:$0xf]
    %v75 = vld [vmem:[%s1 + $0xd8] sm:$0xf]
    %v76 = vld [vmem:[%s1 + $0xdc] sm:$0xf]
    %v77 = vld [vmem:[%s1 + $0xe0] sm:$0xf]
    %v78 = vld [vmem:[%s1 + $0xe4] sm:$0xf]
    %v79 = vld [vmem:[%s1 + $0xe8] sm:$0xf]
    %v80 = vld [vmem:[%s1 + $0xec] sm:$0xf]
    %v81 = vld [vmem:[%s1 + $0xf0] sm:$0xf]
    %v82 = vld [vmem:[%s1 + $0xf4] sm:$0xf]
    %v83 = vld [vmem:[%s1 + $0xf8] sm:$0xf]
    %v84 = vld [vmem:[%s1 + $0xfc] sm:$0xf]
    %v149 = vunpack.c.l.b16 %v21
    %v150 = vunpack.c.l.b16 %v22
    %v151 = vunpack.c.l.b16 %v23
    %v152 = vunpack.c.l.b16 %v24
    %v153 = vunpack.c.l.b16 %v25
    %v154 = vunpack.c.l.b16 %v26
    %v155 = vunpack.c.l.b16 %v27
    %v156 = vunpack.c.l.b16 %v28
    %v157 = vunpack.c.l.b16 %v29
    %v158 = vunpack.c.l.b16 %v30
    %v159 = vunpack.c.l.b16 %v31
    %v160 = vunpack.c.l.b16 %v32
    %v161 = vunpack.c.l.b16 %v33
    %v162 = vunpack.c.l.b16 %v34
    %v163 = vunpack.c.l.b16 %v35
    %v164 = vunpack.c.l.b16 %v36
    %v165 = vunpack.c.l.b16 %v37
    %v166 = vunpack.c.l.b16 %v38
    %v167 = vunpack.c.l.b16 %v39
    %v168 = vunpack.c.l.b16 %v40
    %v169 = vunpack.c.l.b16 %v41
    %v170 = vunpack.c.l.b16 %v42
    %v171 = vunpack.c.l.b16 %v43
    %v172 = vunpack.c.l.b16 %v44
    %v173 = vunpack.c.l.b16 %v45
    %v174 = vunpack.c.l.b16 %v46
    %v175 = vunpack.c.l.b16 %v47
    %v176 = vunpack.c.l.b16 %v48
    %v177 = vunpack.c.l.b16 %v49
    %v178 = vunpack.c.l.b16 %v50
    %v179 = vunpack.c.l.b16 %v51
    %v180 = vunpack.c.l.b16 %v52
    %v181 = vunpack.c.l.b16 %v53
    %v182 = vunpack.c.l.b16 %v54
    %v183 = vunpack.c.l.b16 %v55
    %v184 = vunpack.c.l.b16 %v56
    %v185 = vunpack.c.l.b16 %v57
    %v186 = vunpack.c.l.b16 %v58
    %v187 = vunpack.c.l.b16 %v59
    %v188 = vunpack.c.l.b16 %v60
    %v189 = vunpack.c.l.b16 %v61
    %v190 = vunpack.c.l.b16 %v62
    %v191 = vunpack.c.l.b16 %v63
    %v192 = vunpack.c.l.b16 %v64
    %v193 = vunpack.c.l.b16 %v65
    %v194 = vunpack.c.l.b16 %v66
    %v195 = vunpack.c.l.b16 %v67
    %v196 = vunpack.c.l.b16 %v68
    %v197 = vunpack.c.l.b16 %v69
    %v198 = vunpack.c.l.b16 %v70
    %v199 = vunpack.c.l.b16 %v71
    %v200 = vunpack.c.l.b16 %v72
    %v201 = vunpack.c.l.b16 %v73
    %v202 = vunpack.c.l.b16 %v74
    %v203 = vunpack.c.l.b16 %v75
    %v204 = vunpack.c.l.b16 %v76
    %v205 = vunpack.c.l.b16 %v77
    %v206 = vunpack.c.l.b16 %v78
    %v207 = vunpack.c.l.b16 %v79
    %v208 = vunpack.c.l.b16 %v80
    %v209 = vunpack.c.l.b16 %v81
    %v210 = vunpack.c.l.b16 %v82
    %v211 = vunpack.c.l.b16 %v83
    %v212 = vunpack.c.l.b16 %v84
    %v213 = vpack.c.b16 %v150, %v149
    %v214 = vpack.c.b16 %v152, %v151
    %v215 = vpack.c.b16 %v154, %v153
    %v216 = vpack.c.b16 %v156, %v155
    %v217 = vpack.c.b16 %v158, %v157
    %v218 = vpack.c.b16 %v160, %v159
    %v219 = vpack.c.b16 %v162, %v161
    %v220 = vpack.c.b16 %v164, %v163
    %v221 = vpack.c.b16 %v166, %v165
    %v222 = vpack.c.b16 %v168, %v167
    %v223 = vpack.c.b16 %v170, %v169
    %v224 = vpack.c.b16 %v172, %v171
    %v225 = vpack.c.b16 %v174, %v173
    %v226 = vpack.c.b16 %v176, %v175
    %v227 = vpack.c.b16 %v178, %v177
    %v228 = vpack.c.b16 %v180, %v179
    %v229 = vpack.c.b16 %v182, %v181
    %v230 = vpack.c.b16 %v184, %v183
    %v231 = vpack.c.b16 %v186, %v185
    %v232 = vpack.c.b16 %v188, %v187
    %v233 = vpack.c.b16 %v190, %v189
    %v234 = vpack.c.b16 %v192, %v191
    %v235 = vpack.c.b16 %v194, %v193
    %v236 = vpack.c.b16 %v196, %v195
    %v237 = vpack.c.b16 %v198, %v197
    %v238 = vpack.c.b16 %v200, %v199
    %v239 = vpack.c.b16 %v202, %v201
    %v240 = vpack.c.b16 %v204, %v203
    %v241 = vpack.c.b16 %v206, %v205
    %v242 = vpack.c.b16 %v208, %v207
    %v243 = vpack.c.b16 %v210, %v209
    %v244 = vpack.c.b16 %v212, %v211
    %v246 = vunpack.c.l.b16 %v19
    %v247 = vunpack.c.h.b16 %v19
    %v248 = vpack.c.b16 %v246, %v246
    %v249 = vpack.c.b16 %v247, %v247
    %vm250 = vcmask 39936
    %v252 = vsel %vm250, %v213, 0
    %v255 = vsel %vm250, %v214, 0
    %v258 = vsel %vm250, %v215, 0
    %v261 = vsel %vm250, %v216, 0
    %v264 = vsel %vm250, %v217, 0
    %v267 = vsel %vm250, %v218, 0
    %v270 = vsel %vm250, %v219, 0
    %v273 = vsel %vm250, %v220, 0
    %v276 = vsel %vm250, %v221, 0
    %v279 = vsel %vm250, %v222, 0
    %v282 = vsel %vm250, %v223, 0
    %v285 = vsel %vm250, %v224, 0
    %v288 = vsel %vm250, %v225, 0
    %v291 = vsel %vm250, %v226, 0
    %v294 = vsel %vm250, %v227, 0
    %v297 = vsel %vm250, %v228, 0
    %v300 = vsel %vm250, %v229, 0
    %v303 = vsel %vm250, %v230, 0
    %v306 = vsel %vm250, %v231, 0
    %v309 = vsel %vm250, %v232, 0
    %v312 = vsel %vm250, %v233, 0
    %v315 = vsel %vm250, %v234, 0
    %v318 = vsel %vm250, %v235, 0
    %v321 = vsel %vm250, %v236, 0
    %v324 = vsel %vm250, %v237, 0
    %v327 = vsel %vm250, %v238, 0
    %v330 = vsel %vm250, %v239, 0
    %v333 = vsel %vm250, %v240, 0
    %v336 = vsel %vm250, %v241, 0
    %v339 = vsel %vm250, %v242, 0
    %v342 = vsel %vm250, %v243, 0
    %v345 = vsel %vm250, %v244, 0
    %vm347 = vcmask 1041408
    %vm348 = vcmask 1042432
    %v349 = vsel %vm347, 4294967295, 65535
    %v350 = vsel %vm348, %v349, 0
    %v352 = vand.u32 %v248, %v350
    %v355 = vand.u32 %v249, %v350
    %357 = vmatprep.subr.bf16.mxu0 %v355
    %358 = vmatpush1.bf16.msra.mxu0 %v352
    %359 = vmatprep.subr.bf16.mxu0 0
    %360 = vmatpush1.bf16.msra.mxu0 0
    %361 = vmatprep.subr.bf16.mxu0 0
    %362 = vmatpush1.bf16.msra.mxu0 0
    %363 = vmatprep.subr.bf16.mxu0 0
    %364 = vmatpush1.bf16.msra.mxu0 0
    %365 = vmatprep.subr.bf16.mxu0 0
    %366 = vmatpush1.bf16.msra.mxu0 0
    %367 = vmatprep.subr.bf16.mxu0 0
    %368 = vmatpush1.bf16.msra.mxu0 0
    %369 = vmatprep.subr.bf16.mxu0 0
    %370 = vmatpush1.bf16.msra.mxu0 0
    %371 = vmatprep.subr.bf16.mxu0 0
    %372 = vmatpush1.bf16.msra.mxu0 0
    %373 = vmatprep.subr.bf16.mxu0 0
    %374 = vmatpush1.bf16.msra.mxu0 0
    %375 = vmatprep.subr.bf16.mxu0 0
    %376 = vmatpush1.bf16.msra.mxu0 0
    %377 = vmatprep.subr.bf16.mxu0 0
    %378 = vmatpush1.bf16.msra.mxu0 0
    %379 = vmatprep.subr.bf16.mxu0 0
    %380 = vmatpush1.bf16.msra.mxu0 0
    %381 = vmatprep.subr.bf16.mxu0 0
    %382 = vmatpush1.bf16.msra.mxu0 0
    %383 = vmatprep.subr.bf16.mxu0 0
    %384 = vmatpush1.bf16.msra.mxu0 0
    %385 = vmatprep.subr.bf16.mxu0 0
    %386 = vmatpush1.bf16.msra.mxu0 0
    %387 = vmatprep.subr.bf16.mxu0 0
    %388 = vmatpush1.bf16.msra.mxu0 0
    %389 = vmatprep.mubr.bf16.mxu0 0
    %390 = vmatmul.mubr.bf16.gmra.mrb[0].mxu0 %v252
    %v391 = vpop.f32.mrb[0].mxu0
    %v392 = vadd.f32 0.0, %v391
    %v393 = vpop.f32.mrb[0].mxu0
    %v394 = vadd.f32 0.0, %v393
    %v395 = vpop.f32.mrb[0].mxu0
    %v396 = vadd.f32 0.0, %v395
    %v397 = vpop.f32.mrb[0].mxu0
    %v398 = vadd.f32 0.0, %v397
    %399 = vmatprep.mubr.bf16.mxu0 0
    %400 = vmatmul.mubr.bf16.gmra.mrb[0].mxu0 %v255
    %v401 = vpop.f32.mrb[0].mxu0
    %v402 = vadd.f32 0.0, %v401
    %v403 = vpop.f32.mrb[0].mxu0
    %v404 = vadd.f32 0.0, %v403
    %v405 = vpop.f32.mrb[0].mxu0
    %v406 = vadd.f32 0.0, %v405
    %v407 = vpop.f32.mrb[0].mxu0
    %v408 = vadd.f32 0.0, %v407
    %409 = vmatprep.mubr.bf16.mxu0 0
    %410 = vmatmul.mubr.bf16.gmra.mrb[0].mxu0 %v258
    %v411 = vpop.f32.mrb[0].mxu0
    %v412 = vadd.f32 0.0, %v411
    %v413 = vpop.f32.mrb[0].mxu0
    %v414 = vadd.f32 0.0, %v413
    %v415 = vpop.f32.mrb[0].mxu0
    %v416 = vadd.f32 0.0, %v415
    %v417 = vpop.f32.mrb[0].mxu0
    %v418 = vadd.f32 0.0, %v417
    %419 = vmatprep.mubr.bf16.mxu0 0
    %420 = vmatmul.mubr.bf16.gmra.mrb[0].mxu0 %v261
    %v421 = vpop.f32.mrb[0].mxu0
    %v422 = vadd.f32 0.0, %v421
    %v423 = vpop.f32.mrb[0].mxu0
    %v424 = vadd.f32 0.0, %v423
    %v425 = vpop.f32.mrb[0].mxu0
    %v426 = vadd.f32 0.0, %v425
    %v427 = vpop.f32.mrb[0].mxu0
    %v428 = vadd.f32 0.0, %v427
    %429 = vmatprep.mubr.bf16.mxu0 0
    %430 = vmatmul.mubr.bf16.gmra.mrb[0].mxu0 %v264
    %v431 = vpop.f32.mrb[0].mxu0
    %v432 = vadd.f32 0.0, %v431
    %v433 = vpop.f32.mrb[0].mxu0
    %v434 = vadd.f32 0.0, %v433
    %v435 = vpop.f32.mrb[0].mxu0
    %v436 = vadd.f32 0.0, %v435
    %v437 = vpop.f32.mrb[0].mxu0
    %v438 = vadd.f32 0.0, %v437
    %439 = vmatprep.mubr.bf16.mxu0 0
    %440 = vmatmul.mubr.bf16.gmra.mrb[0].mxu0 %v267
    %v441 = vpop.f32.mrb[0].mxu0
    %v442 = vadd.f32 0.0, %v441
    %v443 = vpop.f32.mrb[0].mxu0
    %v444 = vadd.f32 0.0, %v443
    %v445 = vpop.f32.mrb[0].mxu0
    %v446 = vadd.f32 0.0, %v445
    %v447 = vpop.f32.mrb[0].mxu0
    %v448 = vadd.f32 0.0, %v447
    %449 = vmatprep.mubr.bf16.mxu0 0
    %450 = vmatmul.mubr.bf16.gmra.mrb[0].mxu0 %v270
    %v451 = vpop.f32.mrb[0].mxu0
    %v452 = vadd.f32 0.0, %v451
    %v453 = vpop.f32.mrb[0].mxu0
    %v454 = vadd.f32 0.0, %v453
    %v455 = vpop.f32.mrb[0].mxu0
    %v456 = vadd.f32 0.0, %v455
    %v457 = vpop.f32.mrb[0].mxu0
    %v458 = vadd.f32 0.0, %v457
    %459 = vmatprep.mubr.bf16.mxu0 0
    %460 = vmatmul.mubr.bf16.gmra.mrb[0].mxu0 %v273
    %v461 = vpop.f32.mrb[0].mxu0
    %v462 = vadd.f32 0.0, %v461
    %v463 = vpop.f32.mrb[0].mxu0
    %v464 = vadd.f32 0.0, %v463
    %v465 = vpop.f32.mrb[0].mxu0
    %v466 = vadd.f32 0.0, %v465
    %v467 = vpop.f32.mrb[0].mxu0
    %v468 = vadd.f32 0.0, %v467
    %469 = vmatprep.mubr.bf16.mxu0 0
    %470 = vmatmul.mubr.bf16.gmra.mrb[0].mxu0 %v276
    %v471 = vpop.f32.mrb[0].mxu0
    %v472 = vadd.f32 0.0, %v471
    %v473 = vpop.f32.mrb[0].mxu0
    %v474 = vadd.f32 0.0, %v473
    %v475 = vpop.f32.mrb[0].mxu0
    %v476 = vadd.f32 0.0, %v475
    %v477 = vpop.f32.mrb[0].mxu0
    %v478 = vadd.f32 0.0, %v477
    %479 = vmatprep.mubr.bf16.mxu0 0
    %480 = vmatmul.mubr.bf16.gmra.mrb[0].mxu0 %v279
    %v481 = vpop.f32.mrb[0].mxu0
    %v482 = vadd.f32 0.0, %v481
    %v483 = vpop.f32.mrb[0].mxu0
    %v484 = vadd.f32 0.0, %v483
    %v485 = vpop.f32.mrb[0].mxu0
    %v486 = vadd.f32 0.0, %v485
    %v487 = vpop.f32.mrb[0].mxu0
    %v488 = vadd.f32 0.0, %v487
    %489 = vmatprep.mubr.bf16.mxu0 0
    %490 = vmatmul.mubr.bf16.gmra.mrb[0].mxu0 %v282
    %v491 = vpop.f32.mrb[0].mxu0
    %v492 = vadd.f32 0.0, %v491
    %v493 = vpop.f32.mrb[0].mxu0
    %v494 = vadd.f32 0.0, %v493
    %v495 = vpop.f32.mrb[0].mxu0
    %v496 = vadd.f32 0.0, %v495
    %v497 = vpop.f32.mrb[0].mxu0
    %v498 = vadd.f32 0.0, %v497
    %499 = vmatprep.mubr.bf16.mxu0 0
    %500 = vmatmul.mubr.bf16.gmra.mrb[0].mxu0 %v285
    %v501 = vpop.f32.mrb[0].mxu0
    %v502 = vadd.f32 0.0, %v501
    %v503 = vpop.f32.mrb[0].mxu0
    %v504 = vadd.f32 0.0, %v503
    %v505 = vpop.f32.mrb[0].mxu0
    %v506 = vadd.f32 0.0, %v505
    %v507 = vpop.f32.mrb[0].mxu0
    %v508 = vadd.f32 0.0, %v507
    %509 = vmatprep.mubr.bf16.mxu0 0
    %510 = vmatmul.mubr.bf16.gmra.mrb[0].mxu0 %v288
    %v511 = vpop.f32.mrb[0].mxu0
    %v512 = vadd.f32 0.0, %v511
    %v513 = vpop.f32.mrb[0].mxu0
    %v514 = vadd.f32 0.0, %v513
    %v515 = vpop.f32.mrb[0].mxu0
    %v516 = vadd.f32 0.0, %v515
    %v517 = vpop.f32.mrb[0].mxu0
    %v518 = vadd.f32 0.0, %v517
    %519 = vmatprep.mubr.bf16.mxu0 0
    %520 = vmatmul.mubr.bf16.gmra.mrb[0].mxu0 %v291
    %v521 = vpop.f32.mrb[0].mxu0
    %v522 = vadd.f32 0.0, %v521
    %v523 = vpop.f32.mrb[0].mxu0
    %v524 = vadd.f32 0.0, %v523
    %v525 = vpop.f32.mrb[0].mxu0
    %v526 = vadd.f32 0.0, %v525
    %v527 = vpop.f32.mrb[0].mxu0
    %v528 = vadd.f32 0.0, %v527
    %529 = vmatprep.mubr.bf16.mxu0 0
    %530 = vmatmul.mubr.bf16.gmra.mrb[0].mxu0 %v294
    %v531 = vpop.f32.mrb[0].mxu0
    %v532 = vadd.f32 0.0, %v531
    %v533 = vpop.f32.mrb[0].mxu0
    %v534 = vadd.f32 0.0, %v533
    %v535 = vpop.f32.mrb[0].mxu0
    %v536 = vadd.f32 0.0, %v535
    %v537 = vpop.f32.mrb[0].mxu0
    %v538 = vadd.f32 0.0, %v537
    %539 = vmatprep.mubr.bf16.mxu0 0
    %540 = vmatmul.mubr.bf16.gmra.mrb[0].mxu0 %v297
    %v541 = vpop.f32.mrb[0].mxu0
    %v542 = vadd.f32 0.0, %v541
    %v543 = vpop.f32.mrb[0].mxu0
    %v544 = vadd.f32 0.0, %v543
    %v545 = vpop.f32.mrb[0].mxu0
    %v546 = vadd.f32 0.0, %v545
    %v547 = vpop.f32.mrb[0].mxu0
    %v548 = vadd.f32 0.0, %v547
    %549 = vmatprep.mubr.bf16.mxu0 0
    %550 = vmatmul.mubr.bf16.gmra.mrb[0].mxu0 %v300
    %v551 = vpop.f32.mrb[0].mxu0
    %v552 = vadd.f32 0.0, %v551
    %v553 = vpop.f32.mrb[0].mxu0
    %v554 = vadd.f32 0.0, %v553
    %v555 = vpop.f32.mrb[0].mxu0
    %v556 = vadd.f32 0.0, %v555
    %v557 = vpop.f32.mrb[0].mxu0
    %v558 = vadd.f32 0.0, %v557
    %559 = vmatprep.mubr.bf16.mxu0 0
    %560 = vmatmul.mubr.bf16.gmra.mrb[0].mxu0 %v303
    %v561 = vpop.f32.mrb[0].mxu0
    %v562 = vadd.f32 0.0, %v561
    %v563 = vpop.f32.mrb[0].mxu0
    %v564 = vadd.f32 0.0, %v563
    %v565 = vpop.f32.mrb[0].mxu0
    %v566 = vadd.f32 0.0, %v565
    %v567 = vpop.f32.mrb[0].mxu0
    %v568 = vadd.f32 0.0, %v567
    %569 = vmatprep.mubr.bf16.mxu0 0
    %570 = vmatmul.mubr.bf16.gmra.mrb[0].mxu0 %v306
    %v571 = vpop.f32.mrb[0].mxu0
    %v572 = vadd.f32 0.0, %v571
    %v573 = vpop.f32.mrb[0].mxu0
    %v574 = vadd.f32 0.0, %v573
    %v575 = vpop.f32.mrb[0].mxu0
    %v576 = vadd.f32 0.0, %v575
    %v577 = vpop.f32.mrb[0].mxu0
    %v578 = vadd.f32 0.0, %v577
    %579 = vmatprep.mubr.bf16.mxu0 0
    %580 = vmatmul.mubr.bf16.gmra.mrb[0].mxu0 %v309
    %v581 = vpop.f32.mrb[0].mxu0
    %v582 = vadd.f32 0.0, %v581
    %v583 = vpop.f32.mrb[0].mxu0
    %v584 = vadd.f32 0.0, %v583
    %v585 = vpop.f32.mrb[0].mxu0
    %v586 = vadd.f32 0.0, %v585
    %v587 = vpop.f32.mrb[0].mxu0
    %v588 = vadd.f32 0.0, %v587
    %589 = vmatprep.mubr.bf16.mxu0 0
    %590 = vmatmul.mubr.bf16.gmra.mrb[0].mxu0 %v312
    %v591 = vpop.f32.mrb[0].mxu0
    %v592 = vadd.f32 0.0, %v591
    %v593 = vpop.f32.mrb[0].mxu0
    %v594 = vadd.f32 0.0, %v593
    %v595 = vpop.f32.mrb[0].mxu0
    %v596 = vadd.f32 0.0, %v595
    %v597 = vpop.f32.mrb[0].mxu0
    %v598 = vadd.f32 0.0, %v597
    %599 = vmatprep.mubr.bf16.mxu0 0
    %600 = vmatmul.mubr.bf16.gmra.mrb[0].mxu0 %v315
    %v601 = vpop.f32.mrb[0].mxu0
    %v602 = vadd.f32 0.0, %v601
    %v603 = vpop.f32.mrb[0].mxu0
    %v604 = vadd.f32 0.0, %v603
    %v605 = vpop.f32.mrb[0].mxu0
    %v606 = vadd.f32 0.0, %v605
    %v607 = vpop.f32.mrb[0].mxu0
    %v608 = vadd.f32 0.0, %v607
    %609 = vmatprep.mubr.bf16.mxu0 0
    %610 = vmatmul.mubr.bf16.gmra.mrb[0].mxu0 %v318
    %v611 = vpop.f32.mrb[0].mxu0
    %v612 = vadd.f32 0.0, %v611
    %v613 = vpop.f32.mrb[0].mxu0
    %v614 = vadd.f32 0.0, %v613
    %v615 = vpop.f32.mrb[0].mxu0
    %v616 = vadd.f32 0.0, %v615
    %v617 = vpop.f32.mrb[0].mxu0
    %v618 = vadd.f32 0.0, %v617
    %619 = vmatprep.mubr.bf16.mxu0 0
    %620 = vmatmul.mubr.bf16.gmra.mrb[0].mxu0 %v321
    %v621 = vpop.f32.mrb[0].mxu0
    %v622 = vadd.f32 0.0, %v621
    %v623 = vpop.f32.mrb[0].mxu0
    %v624 = vadd.f32 0.0, %v623
    %v625 = vpop.f32.mrb[0].mxu0
    %v626 = vadd.f32 0.0, %v625
    %v627 = vpop.f32.mrb[0].mxu0
    %v628 = vadd.f32 0.0, %v627
    %629 = vmatprep.mubr.bf16.mxu0 0
    %630 = vmatmul.mubr.bf16.gmra.mrb[0].mxu0 %v324
    %v631 = vpop.f32.mrb[0].mxu0
    %v632 = vadd.f32 0.0, %v631
    %v633 = vpop.f32.mrb[0].mxu0
    %v634 = vadd.f32 0.0, %v633
    %v635 = vpop.f32.mrb[0].mxu0
    %v636 = vadd.f32 0.0, %v635
    %v637 = vpop.f32.mrb[0].mxu0
    %v638 = vadd.f32 0.0, %v637
    %639 = vmatprep.mubr.bf16.mxu0 0
    %640 = vmatmul.mubr.bf16.gmra.mrb[0].mxu0 %v327
    %v641 = vpop.f32.mrb[0].mxu0
    %v642 = vadd.f32 0.0, %v641
    %v643 = vpop.f32.mrb[0].mxu0
    %v644 = vadd.f32 0.0, %v643
    %v645 = vpop.f32.mrb[0].mxu0
    %v646 = vadd.f32 0.0, %v645
    %v647 = vpop.f32.mrb[0].mxu0
    %v648 = vadd.f32 0.0, %v647
    %649 = vmatprep.mubr.bf16.mxu0 0
    %650 = vmatmul.mubr.bf16.gmra.mrb[0].mxu0 %v330
    %v651 = vpop.f32.mrb[0].mxu0
    %v652 = vadd.f32 0.0, %v651
    %v653 = vpop.f32.mrb[0].mxu0
    %v654 = vadd.f32 0.0, %v653
    %v655 = vpop.f32.mrb[0].mxu0
    %v656 = vadd.f32 0.0, %v655
    %v657 = vpop.f32.mrb[0].mxu0
    %v658 = vadd.f32 0.0, %v657
    %659 = vmatprep.mubr.bf16.mxu0 0
    %660 = vmatmul.mubr.bf16.gmra.mrb[0].mxu0 %v333
    %v661 = vpop.f32.mrb[0].mxu0
    %v662 = vadd.f32 0.0, %v661
    %v663 = vpop.f32.mrb[0].mxu0
    %v664 = vadd.f32 0.0, %v663
    %v665 = vpop.f32.mrb[0].mxu0
    %v666 = vadd.f32 0.0, %v665
    %v667 = vpop.f32.mrb[0].mxu0
    %v668 = vadd.f32 0.0, %v667
    %669 = vmatprep.mubr.bf16.mxu0 0
    %670 = vmatmul.mubr.bf16.gmra.mrb[0].mxu0 %v336
    %v671 = vpop.f32.mrb[0].mxu0
    %v672 = vadd.f32 0.0, %v671
    %v673 = vpop.f32.mrb[0].mxu0
    %v674 = vadd.f32 0.0, %v673
    %v675 = vpop.f32.mrb[0].mxu0
    %v676 = vadd.f32 0.0, %v675
    %v677 = vpop.f32.mrb[0].mxu0
    %v678 = vadd.f32 0.0, %v677
    %679 = vmatprep.mubr.bf16.mxu0 0
    %680 = vmatmul.mubr.bf16.gmra.mrb[0].mxu0 %v339
    %v681 = vpop.f32.mrb[0].mxu0
    %v682 = vadd.f32 0.0, %v681
    %v683 = vpop.f32.mrb[0].mxu0
    %v684 = vadd.f32 0.0, %v683
    %v685 = vpop.f32.mrb[0].mxu0
    %v686 = vadd.f32 0.0, %v685
    %v687 = vpop.f32.mrb[0].mxu0
    %v688 = vadd.f32 0.0, %v687
    %689 = vmatprep.mubr.bf16.mxu0 0
    %690 = vmatmul.mubr.bf16.gmra.mrb[0].mxu0 %v342
    %v691 = vpop.f32.mrb[0].mxu0
    %v692 = vadd.f32 0.0, %v691
    %v693 = vpop.f32.mrb[0].mxu0
    %v694 = vadd.f32 0.0, %v693
    %v695 = vpop.f32.mrb[0].mxu0
    %v696 = vadd.f32 0.0, %v695
    %v697 = vpop.f32.mrb[0].mxu0
    %v698 = vadd.f32 0.0, %v697
    %699 = vmatprep.mubr.bf16.mxu0 0
    %700 = vmatmul.mubr.bf16.gmra.mrb[0].mxu0 %v345
    %v701 = vpop.f32.mrb[0].mxu0
    %v702 = vadd.f32 0.0, %v701
    %v703 = vpop.f32.mrb[0].mxu0
    %v704 = vadd.f32 0.0, %v703
    %v705 = vpop.f32.mrb[0].mxu0
    %v706 = vadd.f32 0.0, %v705
    %v707 = vpop.f32.mrb[0].mxu0
    %v708 = vadd.f32 0.0, %v707
    %709 = vdwg.mxu0
    %v711 = vunpack.c.l.b16 %v20
    %v712 = vunpack.c.h.b16 %v20
    %v713 = vpack.c.b16 %v711, %v711
    %v714 = vpack.c.b16 %v712, %v712
    %v716 = vand.u32 %v713, %v350
    %v719 = vand.u32 %v714, %v350
    %721 = vmatprep.subr.bf16.mxu0 %v719
    %722 = vmatpush1.bf16.msra.mxu0 %v716
    %723 = vmatprep.subr.bf16.mxu0 0
    %724 = vmatpush1.bf16.msra.mxu0 0
    %725 = vmatprep.subr.bf16.mxu0 0
    %726 = vmatpush1.bf16.msra.mxu0 0
    %727 = vmatprep.subr.bf16.mxu0 0
    %728 = vmatpush1.bf16.msra.mxu0 0
    %729 = vmatprep.subr.bf16.mxu0 0
    %730 = vmatpush1.bf16.msra.mxu0 0
    %731 = vmatprep.subr.bf16.mxu0 0
    %732 = vmatpush1.bf16.msra.mxu0 0
    %733 = vmatprep.subr.bf16.mxu0 0
    %734 = vmatpush1.bf16.msra.mxu0 0
    %735 = vmatprep.subr.bf16.mxu0 0
    %736 = vmatpush1.bf16.msra.mxu0 0
    %737 = vmatprep.subr.bf16.mxu0 0
    %738 = vmatpush1.bf16.msra.mxu0 0
    %739 = vmatprep.subr.bf16.mxu0 0
    %740 = vmatpush1.bf16.msra.mxu0 0
    %741 = vmatprep.subr.bf16.mxu0 0
    %742 = vmatpush1.bf16.msra.mxu0 0
    %743 = vmatprep.subr.bf16.mxu0 0
    %744 = vmatpush1.bf16.msra.mxu0 0
    %745 = vmatprep.subr.bf16.mxu0 0
    %746 = vmatpush1.bf16.msra.mxu0 0
    %747 = vmatprep.subr.bf16.mxu0 0
    %748 = vmatpush1.bf16.msra.mxu0 0
    %749 = vmatprep.subr.bf16.mxu0 0
    %750 = vmatpush1.bf16.msra.mxu0 0
    %751 = vmatprep.subr.bf16.mxu0 0
    %752 = vmatpush1.bf16.msra.mxu0 0
    %753 = vmatprep.mubr.bf16.mxu0 0
    %754 = vmatmul.mubr.bf16.gmra.mrb[0].mxu0 %v252
    %v755 = vpop.f32.mrb[0].mxu0
    %v756 = vadd.f32 0.0, %v755
    %v757 = vpop.f32.mrb[0].mxu0
    %v758 = vadd.f32 0.0, %v757
    %v759 = vpop.f32.mrb[0].mxu0
    %v760 = vadd.f32 0.0, %v759
    %v761 = vpop.f32.mrb[0].mxu0
    %v762 = vadd.f32 0.0, %v761
    %763 = vmatprep.mubr.bf16.mxu0 0
    %764 = vmatmul.mubr.bf16.gmra.mrb[0].mxu0 %v255
    %v765 = vpop.f32.mrb[0].mxu0
    %v766 = vadd.f32 0.0, %v765
    %v767 = vpop.f32.mrb[0].mxu0
    %v768 = vadd.f32 0.0, %v767
    %v769 = vpop.f32.mrb[0].mxu0
    %v770 = vadd.f32 0.0, %v769
    %v771 = vpop.f32.mrb[0].mxu0
    %v772 = vadd.f32 0.0, %v771
    %773 = vmatprep.mubr.bf16.mxu0 0
    %774 = vmatmul.mubr.bf16.gmra.mrb[0].mxu0 %v258
    %v775 = vpop.f32.mrb[0].mxu0
    %v776 = vadd.f32 0.0, %v775
    %v777 = vpop.f32.mrb[0].mxu0
    %v778 = vadd.f32 0.0, %v777
    %v779 = vpop.f32.mrb[0].mxu0
    %v780 = vadd.f32 0.0, %v779
    %v781 = vpop.f32.mrb[0].mxu0
    %v782 = vadd.f32 0.0, %v781
    %783 = vmatprep.mubr.bf16.mxu0 0
    %784 = vmatmul.mubr.bf16.gmra.mrb[0].mxu0 %v261
    %v785 = vpop.f32.mrb[0].mxu0
    %v786 = vadd.f32 0.0, %v785
    %v787 = vpop.f32.mrb[0].mxu0
    %v788 = vadd.f32 0.0, %v787
    %v789 = vpop.f32.mrb[0].mxu0
    %v790 = vadd.f32 0.0, %v789
    %v791 = vpop.f32.mrb[0].mxu0
    %v792 = vadd.f32 0.0, %v791
    %793 = vmatprep.mubr.bf16.mxu0 0
    %794 = vmatmul.mubr.bf16.gmra.mrb[0].mxu0 %v264
    %v795 = vpop.f32.mrb[0].mxu0
    %v796 = vadd.f32 0.0, %v795
    %v797 = vpop.f32.mrb[0].mxu0
    %v798 = vadd.f32 0.0, %v797
    %v799 = vpop.f32.mrb[0].mxu0
    %v800 = vadd.f32 0.0, %v799
    %v801 = vpop.f32.mrb[0].mxu0
    %v802 = vadd.f32 0.0, %v801
    %803 = vmatprep.mubr.bf16.mxu0 0
    %804 = vmatmul.mubr.bf16.gmra.mrb[0].mxu0 %v267
    %v805 = vpop.f32.mrb[0].mxu0
    %v806 = vadd.f32 0.0, %v805
    %v807 = vpop.f32.mrb[0].mxu0
    %v808 = vadd.f32 0.0, %v807
    %v809 = vpop.f32.mrb[0].mxu0
    %v810 = vadd.f32 0.0, %v809
    %v811 = vpop.f32.mrb[0].mxu0
    %v812 = vadd.f32 0.0, %v811
    %813 = vmatprep.mubr.bf16.mxu0 0
    %814 = vmatmul.mubr.bf16.gmra.mrb[0].mxu0 %v270
    %v815 = vpop.f32.mrb[0].mxu0
    %v816 = vadd.f32 0.0, %v815
    %v817 = vpop.f32.mrb[0].mxu0
    %v818 = vadd.f32 0.0, %v817
    %v819 = vpop.f32.mrb[0].mxu0
    %v820 = vadd.f32 0.0, %v819
    %v821 = vpop.f32.mrb[0].mxu0
    %v822 = vadd.f32 0.0, %v821
    %823 = vmatprep.mubr.bf16.mxu0 0
    %824 = vmatmul.mubr.bf16.gmra.mrb[0].mxu0 %v273
    %v825 = vpop.f32.mrb[0].mxu0
    %v826 = vadd.f32 0.0, %v825
    %v827 = vpop.f32.mrb[0].mxu0
    %v828 = vadd.f32 0.0, %v827
    %v829 = vpop.f32.mrb[0].mxu0
    %v830 = vadd.f32 0.0, %v829
    %v831 = vpop.f32.mrb[0].mxu0
    %v832 = vadd.f32 0.0, %v831
    %833 = vmatprep.mubr.bf16.mxu0 0
    %834 = vmatmul.mubr.bf16.gmra.mrb[0].mxu0 %v276
    %v835 = vpop.f32.mrb[0].mxu0
    %v836 = vadd.f32 0.0, %v835
    %v837 = vpop.f32.mrb[0].mxu0
    %v838 = vadd.f32 0.0, %v837
    %v839 = vpop.f32.mrb[0].mxu0
    %v840 = vadd.f32 0.0, %v839
    %v841 = vpop.f32.mrb[0].mxu0
    %v842 = vadd.f32 0.0, %v841
    %843 = vmatprep.mubr.bf16.mxu0 0
    %844 = vmatmul.mubr.bf16.gmra.mrb[0].mxu0 %v279
    %v845 = vpop.f32.mrb[0].mxu0
    %v846 = vadd.f32 0.0, %v845
    %v847 = vpop.f32.mrb[0].mxu0
    %v848 = vadd.f32 0.0, %v847
    %v849 = vpop.f32.mrb[0].mxu0
    %v850 = vadd.f32 0.0, %v849
    %v851 = vpop.f32.mrb[0].mxu0
    %v852 = vadd.f32 0.0, %v851
    %853 = vmatprep.mubr.bf16.mxu0 0
    %854 = vmatmul.mubr.bf16.gmra.mrb[0].mxu0 %v282
    %v855 = vpop.f32.mrb[0].mxu0
    %v856 = vadd.f32 0.0, %v855
    %v857 = vpop.f32.mrb[0].mxu0
    %v858 = vadd.f32 0.0, %v857
    %v859 = vpop.f32.mrb[0].mxu0
    %v860 = vadd.f32 0.0, %v859
    %v861 = vpop.f32.mrb[0].mxu0
    %v862 = vadd.f32 0.0, %v861
    %863 = vmatprep.mubr.bf16.mxu0 0
    %864 = vmatmul.mubr.bf16.gmra.mrb[0].mxu0 %v285
    %v865 = vpop.f32.mrb[0].mxu0
    %v866 = vadd.f32 0.0, %v865
    %v867 = vpop.f32.mrb[0].mxu0
    %v868 = vadd.f32 0.0, %v867
    %v869 = vpop.f32.mrb[0].mxu0
    %v870 = vadd.f32 0.0, %v869
    %v871 = vpop.f32.mrb[0].mxu0
    %v872 = vadd.f32 0.0, %v871
    %873 = vmatprep.mubr.bf16.mxu0 0
    %874 = vmatmul.mubr.bf16.gmra.mrb[0].mxu0 %v288
    %v875 = vpop.f32.mrb[0].mxu0
    %v876 = vadd.f32 0.0, %v875
    %v877 = vpop.f32.mrb[0].mxu0
    %v878 = vadd.f32 0.0, %v877
    %v879 = vpop.f32.mrb[0].mxu0
    %v880 = vadd.f32 0.0, %v879
    %v881 = vpop.f32.mrb[0].mxu0
    %v882 = vadd.f32 0.0, %v881
    %883 = vmatprep.mubr.bf16.mxu0 0
    %884 = vmatmul.mubr.bf16.gmra.mrb[0].mxu0 %v291
    %v885 = vpop.f32.mrb[0].mxu0
    %v886 = vadd.f32 0.0, %v885
    %v887 = vpop.f32.mrb[0].mxu0
    %v888 = vadd.f32 0.0, %v887
    %v889 = vpop.f32.mrb[0].mxu0
    %v890 = vadd.f32 0.0, %v889
    %v891 = vpop.f32.mrb[0].mxu0
    %v892 = vadd.f32 0.0, %v891
    %893 = vmatprep.mubr.bf16.mxu0 0
    %894 = vmatmul.mubr.bf16.gmra.mrb[0].mxu0 %v294
    %v895 = vpop.f32.mrb[0].mxu0
    %v896 = vadd.f32 0.0, %v895
    %v897 = vpop.f32.mrb[0].mxu0
    %v898 = vadd.f32 0.0, %v897
    %v899 = vpop.f32.mrb[0].mxu0
    %v900 = vadd.f32 0.0, %v899
    %v901 = vpop.f32.mrb[0].mxu0
    %v902 = vadd.f32 0.0, %v901
    %903 = vmatprep.mubr.bf16.mxu0 0
    %904 = vmatmul.mubr.bf16.gmra.mrb[0].mxu0 %v297
    %v905 = vpop.f32.mrb[0].mxu0
    %v906 = vadd.f32 0.0, %v905
    %v907 = vpop.f32.mrb[0].mxu0
    %v908 = vadd.f32 0.0, %v907
    %v909 = vpop.f32.mrb[0].mxu0
    %v910 = vadd.f32 0.0, %v909
    %v911 = vpop.f32.mrb[0].mxu0
    %v912 = vadd.f32 0.0, %v911
    %913 = vmatprep.mubr.bf16.mxu0 0
    %914 = vmatmul.mubr.bf16.gmra.mrb[0].mxu0 %v300
    %v915 = vpop.f32.mrb[0].mxu0
    %v916 = vadd.f32 0.0, %v915
    %v917 = vpop.f32.mrb[0].mxu0
    %v918 = vadd.f32 0.0, %v917
    %v919 = vpop.f32.mrb[0].mxu0
    %v920 = vadd.f32 0.0, %v919
    %v921 = vpop.f32.mrb[0].mxu0
    %v922 = vadd.f32 0.0, %v921
    %923 = vmatprep.mubr.bf16.mxu0 0
    %924 = vmatmul.mubr.bf16.gmra.mrb[0].mxu0 %v303
    %v925 = vpop.f32.mrb[0].mxu0
    %v926 = vadd.f32 0.0, %v925
    %v927 = vpop.f32.mrb[0].mxu0
    %v928 = vadd.f32 0.0, %v927
    %v929 = vpop.f32.mrb[0].mxu0
    %v930 = vadd.f32 0.0, %v929
    %v931 = vpop.f32.mrb[0].mxu0
    %v932 = vadd.f32 0.0, %v931
    %933 = vmatprep.mubr.bf16.mxu0 0
    %934 = vmatmul.mubr.bf16.gmra.mrb[0].mxu0 %v306
    %v935 = vpop.f32.mrb[0].mxu0
    %v936 = vadd.f32 0.0, %v935
    %v937 = vpop.f32.mrb[0].mxu0
    %v938 = vadd.f32 0.0, %v937
    %v939 = vpop.f32.mrb[0].mxu0
    %v940 = vadd.f32 0.0, %v939
    %v941 = vpop.f32.mrb[0].mxu0
    %v942 = vadd.f32 0.0, %v941
    %943 = vmatprep.mubr.bf16.mxu0 0
    %944 = vmatmul.mubr.bf16.gmra.mrb[0].mxu0 %v309
    %v945 = vpop.f32.mrb[0].mxu0
    %v946 = vadd.f32 0.0, %v945
    %v947 = vpop.f32.mrb[0].mxu0
    %v948 = vadd.f32 0.0, %v947
    %v949 = vpop.f32.mrb[0].mxu0
    %v950 = vadd.f32 0.0, %v949
    %v951 = vpop.f32.mrb[0].mxu0
    %v952 = vadd.f32 0.0, %v951
    %953 = vmatprep.mubr.bf16.mxu0 0
    %954 = vmatmul.mubr.bf16.gmra.mrb[0].mxu0 %v312
    %v955 = vpop.f32.mrb[0].mxu0
    %v956 = vadd.f32 0.0, %v955
    %v957 = vpop.f32.mrb[0].mxu0
    %v958 = vadd.f32 0.0, %v957
    %v959 = vpop.f32.mrb[0].mxu0
    %v960 = vadd.f32 0.0, %v959
    %v961 = vpop.f32.mrb[0].mxu0
    %v962 = vadd.f32 0.0, %v961
    %963 = vmatprep.mubr.bf16.mxu0 0
    %964 = vmatmul.mubr.bf16.gmra.mrb[0].mxu0 %v315
    %v965 = vpop.f32.mrb[0].mxu0
    %v966 = vadd.f32 0.0, %v965
    %v967 = vpop.f32.mrb[0].mxu0
    %v968 = vadd.f32 0.0, %v967
    %v969 = vpop.f32.mrb[0].mxu0
    %v970 = vadd.f32 0.0, %v969
    %v971 = vpop.f32.mrb[0].mxu0
    %v972 = vadd.f32 0.0, %v971
    %973 = vmatprep.mubr.bf16.mxu0 0
    %974 = vmatmul.mubr.bf16.gmra.mrb[0].mxu0 %v318
    %v975 = vpop.f32.mrb[0].mxu0
    %v976 = vadd.f32 0.0, %v975
    %v977 = vpop.f32.mrb[0].mxu0
    %v978 = vadd.f32 0.0, %v977
    %v979 = vpop.f32.mrb[0].mxu0
    %v980 = vadd.f32 0.0, %v979
    %v981 = vpop.f32.mrb[0].mxu0
    %v982 = vadd.f32 0.0, %v981
    %983 = vmatprep.mubr.bf16.mxu0 0
    %984 = vmatmul.mubr.bf16.gmra.mrb[0].mxu0 %v321
    %v985 = vpop.f32.mrb[0].mxu0
    %v986 = vadd.f32 0.0, %v985
    %v987 = vpop.f32.mrb[0].mxu0
    %v988 = vadd.f32 0.0, %v987
    %v989 = vpop.f32.mrb[0].mxu0
    %v990 = vadd.f32 0.0, %v989
    %v991 = vpop.f32.mrb[0].mxu0
    %v992 = vadd.f32 0.0, %v991
    %993 = vmatprep.mubr.bf16.mxu0 0
    %994 = vmatmul.mubr.bf16.gmra.mrb[0].mxu0 %v324
    %v995 = vpop.f32.mrb[0].mxu0
    %v996 = vadd.f32 0.0, %v995
    %v997 = vpop.f32.mrb[0].mxu0
    %v998 = vadd.f32 0.0, %v997
    %v999 = vpop.f32.mrb[0].mxu0
    %v1000 = vadd.f32 0.0, %v999
    %v1001 = vpop.f32.mrb[0].mxu0
    %v1002 = vadd.f32 0.0, %v1001
    %1003 = vmatprep.mubr.bf16.mxu0 0
    %1004 = vmatmul.mubr.bf16.gmra.mrb[0].mxu0 %v327
    %v1005 = vpop.f32.mrb[0].mxu0
    %v1006 = vadd.f32 0.0, %v1005
    %v1007 = vpop.f32.mrb[0].mxu0
    %v1008 = vadd.f32 0.0, %v1007
    %v1009 = vpop.f32.mrb[0].mxu0
    %v1010 = vadd.f32 0.0, %v1009
    %v1011 = vpop.f32.mrb[0].mxu0
    %v1012 = vadd.f32 0.0, %v1011
    %1013 = vmatprep.mubr.bf16.mxu0 0
    %1014 = vmatmul.mubr.bf16.gmra.mrb[0].mxu0 %v330
    %v1015 = vpop.f32.mrb[0].mxu0
    %v1016 = vadd.f32 0.0, %v1015
    %v1017 = vpop.f32.mrb[0].mxu0
    %v1018 = vadd.f32 0.0, %v1017
    %v1019 = vpop.f32.mrb[0].mxu0
    %v1020 = vadd.f32 0.0, %v1019
    %v1021 = vpop.f32.mrb[0].mxu0
    %v1022 = vadd.f32 0.0, %v1021
    %1023 = vmatprep.mubr.bf16.mxu0 0
    %1024 = vmatmul.mubr.bf16.gmra.mrb[0].mxu0 %v333
    %v1025 = vpop.f32.mrb[0].mxu0
    %v1026 = vadd.f32 0.0, %v1025
    %v1027 = vpop.f32.mrb[0].mxu0
    %v1028 = vadd.f32 0.0, %v1027
    %v1029 = vpop.f32.mrb[0].mxu0
    %v1030 = vadd.f32 0.0, %v1029
    %v1031 = vpop.f32.mrb[0].mxu0
    %v1032 = vadd.f32 0.0, %v1031
    %1033 = vmatprep.mubr.bf16.mxu0 0
    %1034 = vmatmul.mubr.bf16.gmra.mrb[0].mxu0 %v336
    %v1035 = vpop.f32.mrb[0].mxu0
    %v1036 = vadd.f32 0.0, %v1035
    %v1037 = vpop.f32.mrb[0].mxu0
    %v1038 = vadd.f32 0.0, %v1037
    %v1039 = vpop.f32.mrb[0].mxu0
    %v1040 = vadd.f32 0.0, %v1039
    %v1041 = vpop.f32.mrb[0].mxu0
    %v1042 = vadd.f32 0.0, %v1041
    %1043 = vmatprep.mubr.bf16.mxu0 0
    %1044 = vmatmul.mubr.bf16.gmra.mrb[0].mxu0 %v339
    %v1045 = vpop.f32.mrb[0].mxu0
    %v1046 = vadd.f32 0.0, %v1045
    %v1047 = vpop.f32.mrb[0].mxu0
    %v1048 = vadd.f32 0.0, %v1047
    %v1049 = vpop.f32.mrb[0].mxu0
    %v1050 = vadd.f32 0.0, %v1049
    %v1051 = vpop.f32.mrb[0].mxu0
    %v1052 = vadd.f32 0.0, %v1051
    %1053 = vmatprep.mubr.bf16.mxu0 0
    %1054 = vmatmul.mubr.bf16.gmra.mrb[0].mxu0 %v342
    %v1055 = vpop.f32.mrb[0].mxu0
    %v1056 = vadd.f32 0.0, %v1055
    %v1057 = vpop.f32.mrb[0].mxu0
    %v1058 = vadd.f32 0.0, %v1057
    %v1059 = vpop.f32.mrb[0].mxu0
    %v1060 = vadd.f32 0.0, %v1059
    %v1061 = vpop.f32.mrb[0].mxu0
    %v1062 = vadd.f32 0.0, %v1061
    %1063 = vmatprep.mubr.bf16.mxu0 0
    %1064 = vmatmul.mubr.bf16.gmra.mrb[0].mxu0 %v345
    %v1065 = vpop.f32.mrb[0].mxu0
    %v1066 = vadd.f32 0.0, %v1065
    %v1067 = vpop.f32.mrb[0].mxu0
    %v1068 = vadd.f32 0.0, %v1067
    %v1069 = vpop.f32.mrb[0].mxu0
    %v1070 = vadd.f32 0.0, %v1069
    %v1071 = vpop.f32.mrb[0].mxu0
    %v1072 = vadd.f32 0.0, %v1071
    %1073 = vdwg.mxu0
    %v1074 = vmax.f32 %v392, 0.0
    %v1075 = vmax.f32 %v394, 0.0
    %v1076 = vmax.f32 %v396, 0.0
    %v1077 = vmax.f32 %v398, 0.0
    %v1078 = vmax.f32 %v402, 0.0
    %v1079 = vmax.f32 %v404, 0.0
    %v1080 = vmax.f32 %v406, 0.0
    %v1081 = vmax.f32 %v408, 0.0
    %v1082 = vmax.f32 %v412, 0.0
    %v1083 = vmax.f32 %v414, 0.0
    %v1084 = vmax.f32 %v416, 0.0
    %v1085 = vmax.f32 %v418, 0.0
    %v1086 = vmax.f32 %v422, 0.0
    %v1087 = vmax.f32 %v424, 0.0
    %v1088 = vmax.f32 %v426, 0.0
    %v1089 = vmax.f32 %v428, 0.0
    %v1090 = vmax.f32 %v432, 0.0
    %v1091 = vmax.f32 %v434, 0.0
    %v1092 = vmax.f32 %v436, 0.0
    %v1093 = vmax.f32 %v438, 0.0
    %v1094 = vmax.f32 %v442, 0.0
    %v1095 = vmax.f32 %v444, 0.0
    %v1096 = vmax.f32 %v446, 0.0
    %v1097 = vmax.f32 %v448, 0.0
    %v1098 = vmax.f32 %v452, 0.0
    %v1099 = vmax.f32 %v454, 0.0
    %v1100 = vmax.f32 %v456, 0.0
    %v1101 = vmax.f32 %v458, 0.0
    %v1102 = vmax.f32 %v462, 0.0
    %v1103 = vmax.f32 %v464, 0.0
    %v1104 = vmax.f32 %v466, 0.0
    %v1105 = vmax.f32 %v468, 0.0
    %v1106 = vmax.f32 %v472, 0.0
    %v1107 = vmax.f32 %v474, 0.0
    %v1108 = vmax.f32 %v476, 0.0
    %v1109 = vmax.f32 %v478, 0.0
    %v1110 = vmax.f32 %v482, 0.0
    %v1111 = vmax.f32 %v484, 0.0
    %v1112 = vmax.f32 %v486, 0.0
    %v1113 = vmax.f32 %v488, 0.0
    %v1114 = vmax.f32 %v492, 0.0
    %v1115 = vmax.f32 %v494, 0.0
    %v1116 = vmax.f32 %v496, 0.0
    %v1117 = vmax.f32 %v498, 0.0
    %v1118 = vmax.f32 %v502, 0.0
    %v1119 = vmax.f32 %v504, 0.0
    %v1120 = vmax.f32 %v506, 0.0
    %v1121 = vmax.f32 %v508, 0.0
    %v1122 = vmax.f32 %v512, 0.0
    %v1123 = vmax.f32 %v514, 0.0
    %v1124 = vmax.f32 %v516, 0.0
    %v1125 = vmax.f32 %v518, 0.0
    %v1126 = vmax.f32 %v522, 0.0
    %v1127 = vmax.f32 %v524, 0.0
    %v1128 = vmax.f32 %v526, 0.0
    %v1129 = vmax.f32 %v528, 0.0
    %v1130 = vmax.f32 %v532, 0.0
    %v1131 = vmax.f32 %v534, 0.0
    %v1132 = vmax.f32 %v536, 0.0
    %v1133 = vmax.f32 %v538, 0.0
    %v1134 = vmax.f32 %v542, 0.0
    %v1135 = vmax.f32 %v544, 0.0
    %v1136 = vmax.f32 %v546, 0.0
    %v1137 = vmax.f32 %v548, 0.0
    %v1138 = vmax.f32 %v552, 0.0
    %v1139 = vmax.f32 %v554, 0.0
    %v1140 = vmax.f32 %v556, 0.0
    %v1141 = vmax.f32 %v558, 0.0
    %v1142 = vmax.f32 %v562, 0.0
    %v1143 = vmax.f32 %v564, 0.0
    %v1144 = vmax.f32 %v566, 0.0
    %v1145 = vmax.f32 %v568, 0.0
    %v1146 = vmax.f32 %v572, 0.0
    %v1147 = vmax.f32 %v574, 0.0
    %v1148 = vmax.f32 %v576, 0.0
    %v1149 = vmax.f32 %v578, 0.0
    %v1150 = vmax.f32 %v582, 0.0
    %v1151 = vmax.f32 %v584, 0.0
    %v1152 = vmax.f32 %v586, 0.0
    %v1153 = vmax.f32 %v588, 0.0
    %v1154 = vmax.f32 %v592, 0.0
    %v1155 = vmax.f32 %v594, 0.0
    %v1156 = vmax.f32 %v596, 0.0
    %v1157 = vmax.f32 %v598, 0.0
    %v1158 = vmax.f32 %v602, 0.0
    %v1159 = vmax.f32 %v604, 0.0
    %v1160 = vmax.f32 %v606, 0.0
    %v1161 = vmax.f32 %v608, 0.0
    %v1162 = vmax.f32 %v612, 0.0
    %v1163 = vmax.f32 %v614, 0.0
    %v1164 = vmax.f32 %v616, 0.0
    %v1165 = vmax.f32 %v618, 0.0
    %v1166 = vmax.f32 %v622, 0.0
    %v1167 = vmax.f32 %v624, 0.0
    %v1168 = vmax.f32 %v626, 0.0
    %v1169 = vmax.f32 %v628, 0.0
    %v1170 = vmax.f32 %v632, 0.0
    %v1171 = vmax.f32 %v634, 0.0
    %v1172 = vmax.f32 %v636, 0.0
    %v1173 = vmax.f32 %v638, 0.0
    %v1174 = vmax.f32 %v642, 0.0
    %v1175 = vmax.f32 %v644, 0.0
    %v1176 = vmax.f32 %v646, 0.0
    %v1177 = vmax.f32 %v648, 0.0
    %v1178 = vmax.f32 %v652, 0.0
    %v1179 = vmax.f32 %v654, 0.0
    %v1180 = vmax.f32 %v656, 0.0
    %v1181 = vmax.f32 %v658, 0.0
    %v1182 = vmax.f32 %v662, 0.0
    %v1183 = vmax.f32 %v664, 0.0
    %v1184 = vmax.f32 %v666, 0.0
    %v1185 = vmax.f32 %v668, 0.0
    %v1186 = vmax.f32 %v672, 0.0
    %v1187 = vmax.f32 %v674, 0.0
    %v1188 = vmax.f32 %v676, 0.0
    %v1189 = vmax.f32 %v678, 0.0
    %v1190 = vmax.f32 %v682, 0.0
    %v1191 = vmax.f32 %v684, 0.0
    %v1192 = vmax.f32 %v686, 0.0
    %v1193 = vmax.f32 %v688, 0.0
    %v1194 = vmax.f32 %v692, 0.0
    %v1195 = vmax.f32 %v694, 0.0
    %v1196 = vmax.f32 %v696, 0.0
    %v1197 = vmax.f32 %v698, 0.0
    %v1198 = vmax.f32 %v702, 0.0
    %v1199 = vmax.f32 %v704, 0.0
    %v1200 = vmax.f32 %v706, 0.0
    %v1201 = vmax.f32 %v708, 0.0
    %v1202 = vmax.f32 %v756, 0.0
    %v1203 = vmax.f32 %v758, 0.0
    %v1204 = vmax.f32 %v760, 0.0
    %v1205 = vmax.f32 %v762, 0.0
    %v1206 = vmax.f32 %v766, 0.0
    %v1207 = vmax.f32 %v768, 0.0
    %v1208 = vmax.f32 %v770, 0.0
    %v1209 = vmax.f32 %v772, 0.0
    %v1210 = vmax.f32 %v776, 0.0
    %v1211 = vmax.f32 %v778, 0.0
    %v1212 = vmax.f32 %v780, 0.0
    %v1213 = vmax.f32 %v782, 0.0
    %v1214 = vmax.f32 %v786, 0.0
    %v1215 = vmax.f32 %v788, 0.0
    %v1216 = vmax.f32 %v790, 0.0
    %v1217 = vmax.f32 %v792, 0.0
    %v1218 = vmax.f32 %v796, 0.0
    %v1219 = vmax.f32 %v798, 0.0
    %v1220 = vmax.f32 %v800, 0.0
    %v1221 = vmax.f32 %v802, 0.0
    %v1222 = vmax.f32 %v806, 0.0
    %v1223 = vmax.f32 %v808, 0.0
    %v1224 = vmax.f32 %v810, 0.0
    %v1225 = vmax.f32 %v812, 0.0
    %v1226 = vmax.f32 %v816, 0.0
    %v1227 = vmax.f32 %v818, 0.0
    %v1228 = vmax.f32 %v820, 0.0
    %v1229 = vmax.f32 %v822, 0.0
    %v1230 = vmax.f32 %v826, 0.0
    %v1231 = vmax.f32 %v828, 0.0
    %v1232 = vmax.f32 %v830, 0.0
    %v1233 = vmax.f32 %v832, 0.0
    %v1234 = vmax.f32 %v836, 0.0
    %v1235 = vmax.f32 %v838, 0.0
    %v1236 = vmax.f32 %v840, 0.0
    %v1237 = vmax.f32 %v842, 0.0
    %v1238 = vmax.f32 %v846, 0.0
    %v1239 = vmax.f32 %v848, 0.0
    %v1240 = vmax.f32 %v850, 0.0
    %v1241 = vmax.f32 %v852, 0.0
    %v1242 = vmax.f32 %v856, 0.0
    %v1243 = vmax.f32 %v858, 0.0
    %v1244 = vmax.f32 %v860, 0.0
    %v1245 = vmax.f32 %v862, 0.0
    %v1246 = vmax.f32 %v866, 0.0
    %v1247 = vmax.f32 %v868, 0.0
    %v1248 = vmax.f32 %v870, 0.0
    %v1249 = vmax.f32 %v872, 0.0
    %v1250 = vmax.f32 %v876, 0.0
    %v1251 = vmax.f32 %v878, 0.0
    %v1252 = vmax.f32 %v880, 0.0
    %v1253 = vmax.f32 %v882, 0.0
    %v1254 = vmax.f32 %v886, 0.0
    %v1255 = vmax.f32 %v888, 0.0
    %v1256 = vmax.f32 %v890, 0.0
    %v1257 = vmax.f32 %v892, 0.0
    %v1258 = vmax.f32 %v896, 0.0
    %v1259 = vmax.f32 %v898, 0.0
    %v1260 = vmax.f32 %v900, 0.0
    %v1261 = vmax.f32 %v902, 0.0
    %v1262 = vmax.f32 %v906, 0.0
    %v1263 = vmax.f32 %v908, 0.0
    %v1264 = vmax.f32 %v910, 0.0
    %v1265 = vmax.f32 %v912, 0.0
    %v1266 = vmax.f32 %v916, 0.0
    %v1267 = vmax.f32 %v918, 0.0
    %v1268 = vmax.f32 %v920, 0.0
    %v1269 = vmax.f32 %v922, 0.0
    %v1270 = vmax.f32 %v926, 0.0
    %v1271 = vmax.f32 %v928, 0.0
    %v1272 = vmax.f32 %v930, 0.0
    %v1273 = vmax.f32 %v932, 0.0
    %v1274 = vmax.f32 %v936, 0.0
    %v1275 = vmax.f32 %v938, 0.0
    %v1276 = vmax.f32 %v940, 0.0
    %v1277 = vmax.f32 %v942, 0.0
    %v1278 = vmax.f32 %v946, 0.0
    %v1279 = vmax.f32 %v948, 0.0
    %v1280 = vmax.f32 %v950, 0.0
    %v1281 = vmax.f32 %v952, 0.0
    %v1282 = vmax.f32 %v956, 0.0
    %v1283 = vmax.f32 %v958, 0.0
    %v1284 = vmax.f32 %v960, 0.0
    %v1285 = vmax.f32 %v962, 0.0
    %v1286 = vmax.f32 %v966, 0.0
    %v1287 = vmax.f32 %v968, 0.0
    %v1288 = vmax.f32 %v970, 0.0
    %v1289 = vmax.f32 %v972, 0.0
    %v1290 = vmax.f32 %v976, 0.0
    %v1291 = vmax.f32 %v978, 0.0
    %v1292 = vmax.f32 %v980, 0.0
    %v1293 = vmax.f32 %v982, 0.0
    %v1294 = vmax.f32 %v986, 0.0
    %v1295 = vmax.f32 %v988, 0.0
    %v1296 = vmax.f32 %v990, 0.0
    %v1297 = vmax.f32 %v992, 0.0
    %v1298 = vmax.f32 %v996, 0.0
    %v1299 = vmax.f32 %v998, 0.0
    %v1300 = vmax.f32 %v1000, 0.0
    %v1301 = vmax.f32 %v1002, 0.0
    %v1302 = vmax.f32 %v1006, 0.0
    %v1303 = vmax.f32 %v1008, 0.0
    %v1304 = vmax.f32 %v1010, 0.0
    %v1305 = vmax.f32 %v1012, 0.0
    %v1306 = vmax.f32 %v1016, 0.0
    %v1307 = vmax.f32 %v1018, 0.0
    %v1308 = vmax.f32 %v1020, 0.0
    %v1309 = vmax.f32 %v1022, 0.0
    %v1310 = vmax.f32 %v1026, 0.0
    %v1311 = vmax.f32 %v1028, 0.0
    %v1312 = vmax.f32 %v1030, 0.0
    %v1313 = vmax.f32 %v1032, 0.0
    %v1314 = vmax.f32 %v1036, 0.0
    %v1315 = vmax.f32 %v1038, 0.0
    %v1316 = vmax.f32 %v1040, 0.0
    %v1317 = vmax.f32 %v1042, 0.0
    %v1318 = vmax.f32 %v1046, 0.0
    %v1319 = vmax.f32 %v1048, 0.0
    %v1320 = vmax.f32 %v1050, 0.0
    %v1321 = vmax.f32 %v1052, 0.0
    %v1322 = vmax.f32 %v1056, 0.0
    %v1323 = vmax.f32 %v1058, 0.0
    %v1324 = vmax.f32 %v1060, 0.0
    %v1325 = vmax.f32 %v1062, 0.0
    %v1326 = vmax.f32 %v1066, 0.0
    %v1327 = vmax.f32 %v1068, 0.0
    %v1328 = vmax.f32 %v1070, 0.0
    %v1329 = vmax.f32 %v1072, 0.0
    %v1330 = vadd.f32 %v1074, %v1075
    %1331 = vadd.xlane.f32.xlu0 %v1330
    %v1332 = vpop.xlane.xlu0 %1331
    %v1333 = vadd.f32 %v1076, %v1077
    %1334 = vadd.xlane.f32.xlu0 %v1333
    %v1335 = vpop.xlane.xlu0 %1334
    %v1336 = vadd.f32 %v1078, %v1079
    %1337 = vadd.xlane.f32.xlu0 %v1336
    %v1338 = vpop.xlane.xlu0 %1337
    %v1339 = vadd.f32 %v1080, %v1081
    %1340 = vadd.xlane.f32.xlu0 %v1339
    %v1341 = vpop.xlane.xlu0 %1340
    %v1342 = vadd.f32 %v1082, %v1083
    %1343 = vadd.xlane.f32.xlu0 %v1342
    %v1344 = vpop.xlane.xlu0 %1343
    %v1345 = vadd.f32 %v1084, %v1085
    %1346 = vadd.xlane.f32.xlu0 %v1345
    %v1347 = vpop.xlane.xlu0 %1346
    %v1348 = vadd.f32 %v1086, %v1087
    %1349 = vadd.xlane.f32.xlu0 %v1348
    %v1350 = vpop.xlane.xlu0 %1349
    %v1351 = vadd.f32 %v1088, %v1089
    %1352 = vadd.xlane.f32.xlu0 %v1351
    %v1353 = vpop.xlane.xlu0 %1352
    %v1354 = vadd.f32 %v1090, %v1091
    %1355 = vadd.xlane.f32.xlu0 %v1354
    %v1356 = vpop.xlane.xlu0 %1355
    %v1357 = vadd.f32 %v1092, %v1093
    %1358 = vadd.xlane.f32.xlu0 %v1357
    %v1359 = vpop.xlane.xlu0 %1358
    %v1360 = vadd.f32 %v1094, %v1095
    %1361 = vadd.xlane.f32.xlu0 %v1360
    %v1362 = vpop.xlane.xlu0 %1361
    %v1363 = vadd.f32 %v1096, %v1097
    %1364 = vadd.xlane.f32.xlu0 %v1363
    %v1365 = vpop.xlane.xlu0 %1364
    %v1366 = vadd.f32 %v1098, %v1099
    %1367 = vadd.xlane.f32.xlu0 %v1366
    %v1368 = vpop.xlane.xlu0 %1367
    %v1369 = vadd.f32 %v1100, %v1101
    %1370 = vadd.xlane.f32.xlu0 %v1369
    %v1371 = vpop.xlane.xlu0 %1370
    %v1372 = vadd.f32 %v1102, %v1103
    %1373 = vadd.xlane.f32.xlu0 %v1372
    %v1374 = vpop.xlane.xlu0 %1373
    %v1375 = vadd.f32 %v1104, %v1105
    %1376 = vadd.xlane.f32.xlu0 %v1375
    %v1377 = vpop.xlane.xlu0 %1376
    %v1378 = vadd.f32 %v1106, %v1107
    %1379 = vadd.xlane.f32.xlu0 %v1378
    %v1380 = vpop.xlane.xlu0 %1379
    %v1381 = vadd.f32 %v1108, %v1109
    %1382 = vadd.xlane.f32.xlu0 %v1381
    %v1383 = vpop.xlane.xlu0 %1382
    %v1384 = vadd.f32 %v1110, %v1111
    %1385 = vadd.xlane.f32.xlu0 %v1384
    %v1386 = vpop.xlane.xlu0 %1385
    %v1387 = vadd.f32 %v1112, %v1113
    %1388 = vadd.xlane.f32.xlu0 %v1387
    %v1389 = vpop.xlane.xlu0 %1388
    %v1390 = vadd.f32 %v1114, %v1115
    %1391 = vadd.xlane.f32.xlu0 %v1390
    %v1392 = vpop.xlane.xlu0 %1391
    %v1393 = vadd.f32 %v1116, %v1117
    %1394 = vadd.xlane.f32.xlu0 %v1393
    %v1395 = vpop.xlane.xlu0 %1394
    %v1396 = vadd.f32 %v1118, %v1119
    %1397 = vadd.xlane.f32.xlu0 %v1396
    %v1398 = vpop.xlane.xlu0 %1397
    %v1399 = vadd.f32 %v1120, %v1121
    %1400 = vadd.xlane.f32.xlu0 %v1399
    %v1401 = vpop.xlane.xlu0 %1400
    %v1402 = vadd.f32 %v1122, %v1123
    %1403 = vadd.xlane.f32.xlu0 %v1402
    %v1404 = vpop.xlane.xlu0 %1403
    %v1405 = vadd.f32 %v1124, %v1125
    %1406 = vadd.xlane.f32.xlu0 %v1405
    %v1407 = vpop.xlane.xlu0 %1406
    %v1408 = vadd.f32 %v1126, %v1127
    %1409 = vadd.xlane.f32.xlu0 %v1408
    %v1410 = vpop.xlane.xlu0 %1409
    %v1411 = vadd.f32 %v1128, %v1129
    %1412 = vadd.xlane.f32.xlu0 %v1411
    %v1413 = vpop.xlane.xlu0 %1412
    %v1414 = vadd.f32 %v1130, %v1131
    %1415 = vadd.xlane.f32.xlu0 %v1414
    %v1416 = vpop.xlane.xlu0 %1415
    %v1417 = vadd.f32 %v1132, %v1133
    %1418 = vadd.xlane.f32.xlu0 %v1417
    %v1419 = vpop.xlane.xlu0 %1418
    %v1420 = vadd.f32 %v1134, %v1135
    %1421 = vadd.xlane.f32.xlu0 %v1420
    %v1422 = vpop.xlane.xlu0 %1421
    %v1423 = vadd.f32 %v1136, %v1137
    %1424 = vadd.xlane.f32.xlu0 %v1423
    %v1425 = vpop.xlane.xlu0 %1424
    %v1426 = vadd.f32 %v1138, %v1139
    %1427 = vadd.xlane.f32.xlu0 %v1426
    %v1428 = vpop.xlane.xlu0 %1427
    %v1429 = vadd.f32 %v1140, %v1141
    %1430 = vadd.xlane.f32.xlu0 %v1429
    %v1431 = vpop.xlane.xlu0 %1430
    %v1432 = vadd.f32 %v1142, %v1143
    %1433 = vadd.xlane.f32.xlu0 %v1432
    %v1434 = vpop.xlane.xlu0 %1433
    %v1435 = vadd.f32 %v1144, %v1145
    %1436 = vadd.xlane.f32.xlu0 %v1435
    %v1437 = vpop.xlane.xlu0 %1436
    %v1438 = vadd.f32 %v1146, %v1147
    %1439 = vadd.xlane.f32.xlu0 %v1438
    %v1440 = vpop.xlane.xlu0 %1439
    %v1441 = vadd.f32 %v1148, %v1149
    %1442 = vadd.xlane.f32.xlu0 %v1441
    %v1443 = vpop.xlane.xlu0 %1442
    %v1444 = vadd.f32 %v1150, %v1151
    %1445 = vadd.xlane.f32.xlu0 %v1444
    %v1446 = vpop.xlane.xlu0 %1445
    %v1447 = vadd.f32 %v1152, %v1153
    %1448 = vadd.xlane.f32.xlu0 %v1447
    %v1449 = vpop.xlane.xlu0 %1448
    %v1450 = vadd.f32 %v1154, %v1155
    %1451 = vadd.xlane.f32.xlu0 %v1450
    %v1452 = vpop.xlane.xlu0 %1451
    %v1453 = vadd.f32 %v1156, %v1157
    %1454 = vadd.xlane.f32.xlu0 %v1453
    %v1455 = vpop.xlane.xlu0 %1454
    %v1456 = vadd.f32 %v1158, %v1159
    %1457 = vadd.xlane.f32.xlu0 %v1456
    %v1458 = vpop.xlane.xlu0 %1457
    %v1459 = vadd.f32 %v1160, %v1161
    %1460 = vadd.xlane.f32.xlu0 %v1459
    %v1461 = vpop.xlane.xlu0 %1460
    %v1462 = vadd.f32 %v1162, %v1163
    %1463 = vadd.xlane.f32.xlu0 %v1462
    %v1464 = vpop.xlane.xlu0 %1463
    %v1465 = vadd.f32 %v1164, %v1165
    %1466 = vadd.xlane.f32.xlu0 %v1465
    %v1467 = vpop.xlane.xlu0 %1466
    %v1468 = vadd.f32 %v1166, %v1167
    %1469 = vadd.xlane.f32.xlu0 %v1468
    %v1470 = vpop.xlane.xlu0 %1469
    %v1471 = vadd.f32 %v1168, %v1169
    %1472 = vadd.xlane.f32.xlu0 %v1471
    %v1473 = vpop.xlane.xlu0 %1472
    %v1474 = vadd.f32 %v1170, %v1171
    %1475 = vadd.xlane.f32.xlu0 %v1474
    %v1476 = vpop.xlane.xlu0 %1475
    %v1477 = vadd.f32 %v1172, %v1173
    %1478 = vadd.xlane.f32.xlu0 %v1477
    %v1479 = vpop.xlane.xlu0 %1478
    %v1480 = vadd.f32 %v1174, %v1175
    %1481 = vadd.xlane.f32.xlu0 %v1480
    %v1482 = vpop.xlane.xlu0 %1481
    %v1483 = vadd.f32 %v1176, %v1177
    %1484 = vadd.xlane.f32.xlu0 %v1483
    %v1485 = vpop.xlane.xlu0 %1484
    %v1486 = vadd.f32 %v1178, %v1179
    %1487 = vadd.xlane.f32.xlu0 %v1486
    %v1488 = vpop.xlane.xlu0 %1487
    %v1489 = vadd.f32 %v1180, %v1181
    %1490 = vadd.xlane.f32.xlu0 %v1489
    %v1491 = vpop.xlane.xlu0 %1490
    %v1492 = vadd.f32 %v1182, %v1183
    %1493 = vadd.xlane.f32.xlu0 %v1492
    %v1494 = vpop.xlane.xlu0 %1493
    %v1495 = vadd.f32 %v1184, %v1185
    %1496 = vadd.xlane.f32.xlu0 %v1495
    %v1497 = vpop.xlane.xlu0 %1496
    %v1498 = vadd.f32 %v1186, %v1187
    %1499 = vadd.xlane.f32.xlu0 %v1498
    %v1500 = vpop.xlane.xlu0 %1499
    %v1501 = vadd.f32 %v1188, %v1189
    %1502 = vadd.xlane.f32.xlu0 %v1501
    %v1503 = vpop.xlane.xlu0 %1502
    %v1504 = vadd.f32 %v1190, %v1191
    %1505 = vadd.xlane.f32.xlu0 %v1504
    %v1506 = vpop.xlane.xlu0 %1505
    %v1507 = vadd.f32 %v1192, %v1193
    %1508 = vadd.xlane.f32.xlu0 %v1507
    %v1509 = vpop.xlane.xlu0 %1508
    %v1510 = vadd.f32 %v1194, %v1195
    %1511 = vadd.xlane.f32.xlu0 %v1510
    %v1512 = vpop.xlane.xlu0 %1511
    %v1513 = vadd.f32 %v1196, %v1197
    %1514 = vadd.xlane.f32.xlu0 %v1513
    %v1515 = vpop.xlane.xlu0 %1514
    %v1516 = vadd.f32 %v1198, %v1199
    %1517 = vadd.xlane.f32.xlu0 %v1516
    %v1518 = vpop.xlane.xlu0 %1517
    %v1519 = vadd.f32 %v1200, %v1201
    %1520 = vadd.xlane.f32.xlu0 %v1519
    %v1521 = vpop.xlane.xlu0 %1520
    %v1522 = vadd.f32 %v1202, %v1203
    %1523 = vadd.xlane.f32.xlu0 %v1522
    %v1524 = vpop.xlane.xlu0 %1523
    %v1525 = vadd.f32 %v1204, %v1205
    %1526 = vadd.xlane.f32.xlu0 %v1525
    %v1527 = vpop.xlane.xlu0 %1526
    %v1528 = vadd.f32 %v1206, %v1207
    %1529 = vadd.xlane.f32.xlu0 %v1528
    %v1530 = vpop.xlane.xlu0 %1529
    %v1531 = vadd.f32 %v1208, %v1209
    %1532 = vadd.xlane.f32.xlu0 %v1531
    %v1533 = vpop.xlane.xlu0 %1532
    %v1534 = vadd.f32 %v1210, %v1211
    %1535 = vadd.xlane.f32.xlu0 %v1534
    %v1536 = vpop.xlane.xlu0 %1535
    %v1537 = vadd.f32 %v1212, %v1213
    %1538 = vadd.xlane.f32.xlu0 %v1537
    %v1539 = vpop.xlane.xlu0 %1538
    %v1540 = vadd.f32 %v1214, %v1215
    %1541 = vadd.xlane.f32.xlu0 %v1540
    %v1542 = vpop.xlane.xlu0 %1541
    %v1543 = vadd.f32 %v1216, %v1217
    %1544 = vadd.xlane.f32.xlu0 %v1543
    %v1545 = vpop.xlane.xlu0 %1544
    %v1546 = vadd.f32 %v1218, %v1219
    %1547 = vadd.xlane.f32.xlu0 %v1546
    %v1548 = vpop.xlane.xlu0 %1547
    %v1549 = vadd.f32 %v1220, %v1221
    %1550 = vadd.xlane.f32.xlu0 %v1549
    %v1551 = vpop.xlane.xlu0 %1550
    %v1552 = vadd.f32 %v1222, %v1223
    %1553 = vadd.xlane.f32.xlu0 %v1552
    %v1554 = vpop.xlane.xlu0 %1553
    %v1555 = vadd.f32 %v1224, %v1225
    %1556 = vadd.xlane.f32.xlu0 %v1555
    %v1557 = vpop.xlane.xlu0 %1556
    %v1558 = vadd.f32 %v1226, %v1227
    %1559 = vadd.xlane.f32.xlu0 %v1558
    %v1560 = vpop.xlane.xlu0 %1559
    %v1561 = vadd.f32 %v1228, %v1229
    %1562 = vadd.xlane.f32.xlu0 %v1561
    %v1563 = vpop.xlane.xlu0 %1562
    %v1564 = vadd.f32 %v1230, %v1231
    %1565 = vadd.xlane.f32.xlu0 %v1564
    %v1566 = vpop.xlane.xlu0 %1565
    %v1567 = vadd.f32 %v1232, %v1233
    %1568 = vadd.xlane.f32.xlu0 %v1567
    %v1569 = vpop.xlane.xlu0 %1568
    %v1570 = vadd.f32 %v1234, %v1235
    %1571 = vadd.xlane.f32.xlu0 %v1570
    %v1572 = vpop.xlane.xlu0 %1571
    %v1573 = vadd.f32 %v1236, %v1237
    %1574 = vadd.xlane.f32.xlu0 %v1573
    %v1575 = vpop.xlane.xlu0 %1574
    %v1576 = vadd.f32 %v1238, %v1239
    %1577 = vadd.xlane.f32.xlu0 %v1576
    %v1578 = vpop.xlane.xlu0 %1577
    %v1579 = vadd.f32 %v1240, %v1241
    %1580 = vadd.xlane.f32.xlu0 %v1579
    %v1581 = vpop.xlane.xlu0 %1580
    %v1582 = vadd.f32 %v1242, %v1243
    %1583 = vadd.xlane.f32.xlu0 %v1582
    %v1584 = vpop.xlane.xlu0 %1583
    %v1585 = vadd.f32 %v1244, %v1245
    %1586 = vadd.xlane.f32.xlu0 %v1585
    %v1587 = vpop.xlane.xlu0 %1586
    %v1588 = vadd.f32 %v1246, %v1247
    %1589 = vadd.xlane.f32.xlu0 %v1588
    %v1590 = vpop.xlane.xlu0 %1589
    %v1591 = vadd.f32 %v1248, %v1249
    %1592 = vadd.xlane.f32.xlu0 %v1591
    %v1593 = vpop.xlane.xlu0 %1592
    %v1594 = vadd.f32 %v1250, %v1251
    %1595 = vadd.xlane.f32.xlu0 %v1594
    %v1596 = vpop.xlane.xlu0 %1595
    %v1597 = vadd.f32 %v1252, %v1253
    %1598 = vadd.xlane.f32.xlu0 %v1597
    %v1599 = vpop.xlane.xlu0 %1598
    %v1600 = vadd.f32 %v1254, %v1255
    %1601 = vadd.xlane.f32.xlu0 %v1600
    %v1602 = vpop.xlane.xlu0 %1601
    %v1603 = vadd.f32 %v1256, %v1257
    %1604 = vadd.xlane.f32.xlu0 %v1603
    %v1605 = vpop.xlane.xlu0 %1604
    %v1606 = vadd.f32 %v1258, %v1259
    %1607 = vadd.xlane.f32.xlu0 %v1606
    %v1608 = vpop.xlane.xlu0 %1607
    %v1609 = vadd.f32 %v1260, %v1261
    %1610 = vadd.xlane.f32.xlu0 %v1609
    %v1611 = vpop.xlane.xlu0 %1610
    %v1612 = vadd.f32 %v1262, %v1263
    %1613 = vadd.xlane.f32.xlu0 %v1612
    %v1614 = vpop.xlane.xlu0 %1613
    %v1615 = vadd.f32 %v1264, %v1265
    %1616 = vadd.xlane.f32.xlu0 %v1615
    %v1617 = vpop.xlane.xlu0 %1616
    %v1618 = vadd.f32 %v1266, %v1267
    %1619 = vadd.xlane.f32.xlu0 %v1618
    %v1620 = vpop.xlane.xlu0 %1619
    %v1621 = vadd.f32 %v1268, %v1269
    %1622 = vadd.xlane.f32.xlu0 %v1621
    %v1623 = vpop.xlane.xlu0 %1622
    %v1624 = vadd.f32 %v1270, %v1271
    %1625 = vadd.xlane.f32.xlu0 %v1624
    %v1626 = vpop.xlane.xlu0 %1625
    %v1627 = vadd.f32 %v1272, %v1273
    %1628 = vadd.xlane.f32.xlu0 %v1627
    %v1629 = vpop.xlane.xlu0 %1628
    %v1630 = vadd.f32 %v1274, %v1275
    %1631 = vadd.xlane.f32.xlu0 %v1630
    %v1632 = vpop.xlane.xlu0 %1631
    %v1633 = vadd.f32 %v1276, %v1277
    %1634 = vadd.xlane.f32.xlu0 %v1633
    %v1635 = vpop.xlane.xlu0 %1634
    %v1636 = vadd.f32 %v1278, %v1279
    %1637 = vadd.xlane.f32.xlu0 %v1636
    %v1638 = vpop.xlane.xlu0 %1637
    %v1639 = vadd.f32 %v1280, %v1281
    %1640 = vadd.xlane.f32.xlu0 %v1639
    %v1641 = vpop.xlane.xlu0 %1640
    %v1642 = vadd.f32 %v1282, %v1283
    %1643 = vadd.xlane.f32.xlu0 %v1642
    %v1644 = vpop.xlane.xlu0 %1643
    %v1645 = vadd.f32 %v1284, %v1285
    %1646 = vadd.xlane.f32.xlu0 %v1645
    %v1647 = vpop.xlane.xlu0 %1646
    %v1648 = vadd.f32 %v1286, %v1287
    %1649 = vadd.xlane.f32.xlu0 %v1648
    %v1650 = vpop.xlane.xlu0 %1649
    %v1651 = vadd.f32 %v1288, %v1289
    %1652 = vadd.xlane.f32.xlu0 %v1651
    %v1653 = vpop.xlane.xlu0 %1652
    %v1654 = vadd.f32 %v1290, %v1291
    %1655 = vadd.xlane.f32.xlu0 %v1654
    %v1656 = vpop.xlane.xlu0 %1655
    %v1657 = vadd.f32 %v1292, %v1293
    %1658 = vadd.xlane.f32.xlu0 %v1657
    %v1659 = vpop.xlane.xlu0 %1658
    %v1660 = vadd.f32 %v1294, %v1295
    %1661 = vadd.xlane.f32.xlu0 %v1660
    %v1662 = vpop.xlane.xlu0 %1661
    %v1663 = vadd.f32 %v1296, %v1297
    %1664 = vadd.xlane.f32.xlu0 %v1663
    %v1665 = vpop.xlane.xlu0 %1664
    %v1666 = vadd.f32 %v1298, %v1299
    %1667 = vadd.xlane.f32.xlu0 %v1666
    %v1668 = vpop.xlane.xlu0 %1667
    %v1669 = vadd.f32 %v1300, %v1301
    %1670 = vadd.xlane.f32.xlu0 %v1669
    %v1671 = vpop.xlane.xlu0 %1670
    %v1672 = vadd.f32 %v1302, %v1303
    %1673 = vadd.xlane.f32.xlu0 %v1672
    %v1674 = vpop.xlane.xlu0 %1673
    %v1675 = vadd.f32 %v1304, %v1305
    %1676 = vadd.xlane.f32.xlu0 %v1675
    %v1677 = vpop.xlane.xlu0 %1676
    %v1678 = vadd.f32 %v1306, %v1307
    %1679 = vadd.xlane.f32.xlu0 %v1678
    %v1680 = vpop.xlane.xlu0 %1679
    %v1681 = vadd.f32 %v1308, %v1309
    %1682 = vadd.xlane.f32.xlu0 %v1681
    %v1683 = vpop.xlane.xlu0 %1682
    %v1684 = vadd.f32 %v1310, %v1311
    %1685 = vadd.xlane.f32.xlu0 %v1684
    %v1686 = vpop.xlane.xlu0 %1685
    %v1687 = vadd.f32 %v1312, %v1313
    %1688 = vadd.xlane.f32.xlu0 %v1687
    %v1689 = vpop.xlane.xlu0 %1688
    %v1690 = vadd.f32 %v1314, %v1315
    %1691 = vadd.xlane.f32.xlu0 %v1690
    %v1692 = vpop.xlane.xlu0 %1691
    %v1693 = vadd.f32 %v1316, %v1317
    %1694 = vadd.xlane.f32.xlu0 %v1693
    %v1695 = vpop.xlane.xlu0 %1694
    %v1696 = vadd.f32 %v1318, %v1319
    %1697 = vadd.xlane.f32.xlu0 %v1696
    %v1698 = vpop.xlane.xlu0 %1697
    %v1699 = vadd.f32 %v1320, %v1321
    %1700 = vadd.xlane.f32.xlu0 %v1699
    %v1701 = vpop.xlane.xlu0 %1700
    %v1702 = vadd.f32 %v1322, %v1323
    %1703 = vadd.xlane.f32.xlu0 %v1702
    %v1704 = vpop.xlane.xlu0 %1703
    %v1705 = vadd.f32 %v1324, %v1325
    %1706 = vadd.xlane.f32.xlu0 %v1705
    %v1707 = vpop.xlane.xlu0 %1706
    %v1708 = vadd.f32 %v1326, %v1327
    %1709 = vadd.xlane.f32.xlu0 %v1708
    %v1710 = vpop.xlane.xlu0 %1709
    %v1711 = vadd.f32 %v1328, %v1329
    %1712 = vadd.xlane.f32.xlu0 %v1711
    %v1713 = vpop.xlane.xlu0 %1712
    %v1714 = vpack.c.bf16 %v1335, %v1332
    %v1715 = vpack.c.bf16 %v1341, %v1338
    %v1716 = vpack.c.bf16 %v1347, %v1344
    %v1717 = vpack.c.bf16 %v1353, %v1350
    %v1718 = vpack.c.bf16 %v1359, %v1356
    %v1719 = vpack.c.bf16 %v1365, %v1362
    %v1720 = vpack.c.bf16 %v1371, %v1368
    %v1721 = vpack.c.bf16 %v1377, %v1374
    %v1722 = vpack.c.bf16 %v1383, %v1380
    %v1723 = vpack.c.bf16 %v1389, %v1386
    %v1724 = vpack.c.bf16 %v1395, %v1392
    %v1725 = vpack.c.bf16 %v1401, %v1398
    %v1726 = vpack.c.bf16 %v1407, %v1404
    %v1727 = vpack.c.bf16 %v1413, %v1410
    %v1728 = vpack.c.bf16 %v1419, %v1416
    %v1729 = vpack.c.bf16 %v1425, %v1422
    %v1730 = vpack.c.bf16 %v1431, %v1428
    %v1731 = vpack.c.bf16 %v1437, %v1434
    %v1732 = vpack.c.bf16 %v1443, %v1440
    %v1733 = vpack.c.bf16 %v1449, %v1446
    %v1734 = vpack.c.bf16 %v1455, %v1452
    %v1735 = vpack.c.bf16 %v1461, %v1458
    %v1736 = vpack.c.bf16 %v1467, %v1464
    %v1737 = vpack.c.bf16 %v1473, %v1470
    %v1738 = vpack.c.bf16 %v1479, %v1476
    %v1739 = vpack.c.bf16 %v1485, %v1482
    %v1740 = vpack.c.bf16 %v1491, %v1488
    %v1741 = vpack.c.bf16 %v1497, %v1494
    %v1742 = vpack.c.bf16 %v1503, %v1500
    %v1743 = vpack.c.bf16 %v1509, %v1506
    %v1744 = vpack.c.bf16 %v1515, %v1512
    %v1745 = vpack.c.bf16 %v1521, %v1518
    %v1746 = vpack.c.bf16 %v1527, %v1524
    %v1747 = vpack.c.bf16 %v1533, %v1530
    %v1748 = vpack.c.bf16 %v1539, %v1536
    %v1749 = vpack.c.bf16 %v1545, %v1542
    %v1750 = vpack.c.bf16 %v1551, %v1548
    %v1751 = vpack.c.bf16 %v1557, %v1554
    %v1752 = vpack.c.bf16 %v1563, %v1560
    %v1753 = vpack.c.bf16 %v1569, %v1566
    %v1754 = vpack.c.bf16 %v1575, %v1572
    %v1755 = vpack.c.bf16 %v1581, %v1578
    %v1756 = vpack.c.bf16 %v1587, %v1584
    %v1757 = vpack.c.bf16 %v1593, %v1590
    %v1758 = vpack.c.bf16 %v1599, %v1596
    %v1759 = vpack.c.bf16 %v1605, %v1602
    %v1760 = vpack.c.bf16 %v1611, %v1608
    %v1761 = vpack.c.bf16 %v1617, %v1614
    %v1762 = vpack.c.bf16 %v1623, %v1620
    %v1763 = vpack.c.bf16 %v1629, %v1626
    %v1764 = vpack.c.bf16 %v1635, %v1632
    %v1765 = vpack.c.bf16 %v1641, %v1638
    %v1766 = vpack.c.bf16 %v1647, %v1644
    %v1767 = vpack.c.bf16 %v1653, %v1650
    %v1768 = vpack.c.bf16 %v1659, %v1656
    %v1769 = vpack.c.bf16 %v1665, %v1662
    %v1770 = vpack.c.bf16 %v1671, %v1668
    %v1771 = vpack.c.bf16 %v1677, %v1674
    %v1772 = vpack.c.bf16 %v1683, %v1680
    %v1773 = vpack.c.bf16 %v1689, %v1686
    %v1774 = vpack.c.bf16 %v1695, %v1692
    %v1775 = vpack.c.bf16 %v1701, %v1698
    %v1776 = vpack.c.bf16 %v1707, %v1704
    %v1777 = vpack.c.bf16 %v1713, %v1710
    %v1778 = vld [vmem:[%s2] sm:$0xf]
    %v1779 = vld [vmem:[%s2 + $0x4] sm:$0xf]
    %v1780 = vld [vmem:[%s2 + $0x8] sm:$0xf]
    %v1781 = vld [vmem:[%s2 + $0xc] sm:$0xf]
    %v1782 = vld [vmem:[%s2 + $0x10] sm:$0xf]
    %v1783 = vld [vmem:[%s2 + $0x14] sm:$0xf]
    %v1784 = vld [vmem:[%s2 + $0x18] sm:$0xf]
    %v1785 = vld [vmem:[%s2 + $0x1c] sm:$0xf]
    %v1786 = vld [vmem:[%s2 + $0x20] sm:$0xf]
    %v1787 = vld [vmem:[%s2 + $0x24] sm:$0xf]
    %v1788 = vld [vmem:[%s2 + $0x28] sm:$0xf]
    %v1789 = vld [vmem:[%s2 + $0x2c] sm:$0xf]
    %v1790 = vld [vmem:[%s2 + $0x30] sm:$0xf]
    %v1791 = vld [vmem:[%s2 + $0x34] sm:$0xf]
    %v1792 = vld [vmem:[%s2 + $0x38] sm:$0xf]
    %v1793 = vld [vmem:[%s2 + $0x3c] sm:$0xf]
    %v1794 = vld [vmem:[%s2 + $0x40] sm:$0xf]
    %v1795 = vld [vmem:[%s2 + $0x44] sm:$0xf]
    %v1796 = vld [vmem:[%s2 + $0x48] sm:$0xf]
    %v1797 = vld [vmem:[%s2 + $0x4c] sm:$0xf]
    %v1798 = vld [vmem:[%s2 + $0x50] sm:$0xf]
    %v1799 = vld [vmem:[%s2 + $0x54] sm:$0xf]
    %v1800 = vld [vmem:[%s2 + $0x58] sm:$0xf]
    %v1801 = vld [vmem:[%s2 + $0x5c] sm:$0xf]
    %v1802 = vld [vmem:[%s2 + $0x60] sm:$0xf]
    %v1803 = vld [vmem:[%s2 + $0x64] sm:$0xf]
    %v1804 = vld [vmem:[%s2 + $0x68] sm:$0xf]
    %v1805 = vld [vmem:[%s2 + $0x6c] sm:$0xf]
    %v1806 = vld [vmem:[%s2 + $0x70] sm:$0xf]
    %v1807 = vld [vmem:[%s2 + $0x74] sm:$0xf]
    %v1808 = vld [vmem:[%s2 + $0x78] sm:$0xf]
    %v1809 = vld [vmem:[%s2 + $0x7c] sm:$0xf]
    %v1810 = vld [vmem:[%s2 + $0x80] sm:$0xf]
    %v1811 = vld [vmem:[%s2 + $0x84] sm:$0xf]
    %v1812 = vld [vmem:[%s2 + $0x88] sm:$0xf]
    %v1813 = vld [vmem:[%s2 + $0x8c] sm:$0xf]
    %v1814 = vld [vmem:[%s2 + $0x90] sm:$0xf]
    %v1815 = vld [vmem:[%s2 + $0x94] sm:$0xf]
    %v1816 = vld [vmem:[%s2 + $0x98] sm:$0xf]
    %v1817 = vld [vmem:[%s2 + $0x9c] sm:$0xf]
    %v1818 = vld [vmem:[%s2 + $0xa0] sm:$0xf]
    %v1819 = vld [vmem:[%s2 + $0xa4] sm:$0xf]
    %v1820 = vld [vmem:[%s2 + $0xa8] sm:$0xf]
    %v1821 = vld [vmem:[%s2 + $0xac] sm:$0xf]
    %v1822 = vld [vmem:[%s2 + $0xb0] sm:$0xf]
    %v1823 = vld [vmem:[%s2 + $0xb4] sm:$0xf]
    %v1824 = vld [vmem:[%s2 + $0xb8] sm:$0xf]
    %v1825 = vld [vmem:[%s2 + $0xbc] sm:$0xf]
    %v1826 = vld [vmem:[%s2 + $0xc0] sm:$0xf]
    %v1827 = vld [vmem:[%s2 + $0xc4] sm:$0xf]
    %v1828 = vld [vmem:[%s2 + $0xc8] sm:$0xf]
    %v1829 = vld [vmem:[%s2 + $0xcc] sm:$0xf]
    %v1830 = vld [vmem:[%s2 + $0xd0] sm:$0xf]
    %v1831 = vld [vmem:[%s2 + $0xd4] sm:$0xf]
    %v1832 = vld [vmem:[%s2 + $0xd8] sm:$0xf]
    %v1833 = vld [vmem:[%s2 + $0xdc] sm:$0xf]
    %v1834 = vld [vmem:[%s2 + $0xe0] sm:$0xf]
    %v1835 = vld [vmem:[%s2 + $0xe4] sm:$0xf]
    %v1836 = vld [vmem:[%s2 + $0xe8] sm:$0xf]
    %v1837 = vld [vmem:[%s2 + $0xec] sm:$0xf]
    %v1838 = vld [vmem:[%s2 + $0xf0] sm:$0xf]
    %v1839 = vld [vmem:[%s2 + $0xf4] sm:$0xf]
    %v1840 = vld [vmem:[%s2 + $0xf8] sm:$0xf]
    %v1841 = vld [vmem:[%s2 + $0xfc] sm:$0xf]
    %v1842 = vld [vmem:[%s3] sm:$0x1]
    %v1844 = vlaneseq
    %v1845 = vshrl.u32 %v1844, 7
    %v1846 = vsub.s32 0, %v1845
    %v1847 = vrot.slane %v1842, %v1846
    %v1913 = vunpack.c.l.b16 %v1714
    %v1914 = vunpack.c.h.b16 %v1714
    %v1915 = vunpack.c.l.b16 %v1715
    %v1916 = vunpack.c.h.b16 %v1715
    %v1917 = vunpack.c.l.b16 %v1716
    %v1918 = vunpack.c.h.b16 %v1716
    %v1919 = vunpack.c.l.b16 %v1717
    %v1920 = vunpack.c.h.b16 %v1717
    %v1921 = vunpack.c.l.b16 %v1718
    %v1922 = vunpack.c.h.b16 %v1718
    %v1923 = vunpack.c.l.b16 %v1719
    %v1924 = vunpack.c.h.b16 %v1719
    %v1925 = vunpack.c.l.b16 %v1720
    %v1926 = vunpack.c.h.b16 %v1720
    %v1927 = vunpack.c.l.b16 %v1721
    %v1928 = vunpack.c.h.b16 %v1721
    %v1929 = vunpack.c.l.b16 %v1722
    %v1930 = vunpack.c.h.b16 %v1722
    %v1931 = vunpack.c.l.b16 %v1723
    %v1932 = vunpack.c.h.b16 %v1723
    %v1933 = vunpack.c.l.b16 %v1724
    %v1934 = vunpack.c.h.b16 %v1724
    %v1935 = vunpack.c.l.b16 %v1725
    %v1936 = vunpack.c.h.b16 %v1725
    %v1937 = vunpack.c.l.b16 %v1726
    %v1938 = vunpack.c.h.b16 %v1726
    %v1939 = vunpack.c.l.b16 %v1727
    %v1940 = vunpack.c.h.b16 %v1727
    %v1941 = vunpack.c.l.b16 %v1728
    %v1942 = vunpack.c.h.b16 %v1728
    %v1943 = vunpack.c.l.b16 %v1729
    %v1944 = vunpack.c.h.b16 %v1729
    %v1945 = vunpack.c.l.b16 %v1730
    %v1946 = vunpack.c.h.b16 %v1730
    %v1947 = vunpack.c.l.b16 %v1731
    %v1948 = vunpack.c.h.b16 %v1731
    %v1949 = vunpack.c.l.b16 %v1732
    %v1950 = vunpack.c.h.b16 %v1732
    %v1951 = vunpack.c.l.b16 %v1733
    %v1952 = vunpack.c.h.b16 %v1733
    %v1953 = vunpack.c.l.b16 %v1734
    %v1954 = vunpack.c.h.b16 %v1734
    %v1955 = vunpack.c.l.b16 %v1735
    %v1956 = vunpack.c.h.b16 %v1735
    %v1957 = vunpack.c.l.b16 %v1736
    %v1958 = vunpack.c.h.b16 %v1736
    %v1959 = vunpack.c.l.b16 %v1737
    %v1960 = vunpack.c.h.b16 %v1737
    %v1961 = vunpack.c.l.b16 %v1738
    %v1962 = vunpack.c.h.b16 %v1738
    %v1963 = vunpack.c.l.b16 %v1739
    %v1964 = vunpack.c.h.b16 %v1739
    %v1965 = vunpack.c.l.b16 %v1740
    %v1966 = vunpack.c.h.b16 %v1740
    %v1967 = vunpack.c.l.b16 %v1741
    %v1968 = vunpack.c.h.b16 %v1741
    %v1969 = vunpack.c.l.b16 %v1742
    %v1970 = vunpack.c.h.b16 %v1742
    %v1971 = vunpack.c.l.b16 %v1743
    %v1972 = vunpack.c.h.b16 %v1743
    %v1973 = vunpack.c.l.b16 %v1744
    %v1974 = vunpack.c.h.b16 %v1744
    %v1975 = vunpack.c.l.b16 %v1745
    %v1976 = vunpack.c.h.b16 %v1745
    %v1977 = vunpack.c.l.b16 %v1746
    %v1978 = vunpack.c.h.b16 %v1746
    %v1979 = vunpack.c.l.b16 %v1747
    %v1980 = vunpack.c.h.b16 %v1747
    %v1981 = vunpack.c.l.b16 %v1748
    %v1982 = vunpack.c.h.b16 %v1748
    %v1983 = vunpack.c.l.b16 %v1749
    %v1984 = vunpack.c.h.b16 %v1749
    %v1985 = vunpack.c.l.b16 %v1750
    %v1986 = vunpack.c.h.b16 %v1750
    %v1987 = vunpack.c.l.b16 %v1751
    %v1988 = vunpack.c.h.b16 %v1751
    %v1989 = vunpack.c.l.b16 %v1752
    %v1990 = vunpack.c.h.b16 %v1752
    %v1991 = vunpack.c.l.b16 %v1753
    %v1992 = vunpack.c.h.b16 %v1753
    %v1993 = vunpack.c.l.b16 %v1754
    %v1994 = vunpack.c.h.b16 %v1754
    %v1995 = vunpack.c.l.b16 %v1755
    %v1996 = vunpack.c.h.b16 %v1755
    %v1997 = vunpack.c.l.b16 %v1756
    %v1998 = vunpack.c.h.b16 %v1756
    %v1999 = vunpack.c.l.b16 %v1757
    %v2000 = vunpack.c.h.b16 %v1757
    %v2001 = vunpack.c.l.b16 %v1758
    %v2002 = vunpack.c.h.b16 %v1758
    %v2003 = vunpack.c.l.b16 %v1759
    %v2004 = vunpack.c.h.b16 %v1759
    %v2005 = vunpack.c.l.b16 %v1760
    %v2006 = vunpack.c.h.b16 %v1760
    %v2007 = vunpack.c.l.b16 %v1761
    %v2008 = vunpack.c.h.b16 %v1761
    %v2009 = vunpack.c.l.b16 %v1762
    %v2010 = vunpack.c.h.b16 %v1762
    %v2011 = vunpack.c.l.b16 %v1763
    %v2012 = vunpack.c.h.b16 %v1763
    %v2013 = vunpack.c.l.b16 %v1764
    %v2014 = vunpack.c.h.b16 %v1764
    %v2015 = vunpack.c.l.b16 %v1765
    %v2016 = vunpack.c.h.b16 %v1765
    %v2017 = vunpack.c.l.b16 %v1766
    %v2018 = vunpack.c.h.b16 %v1766
    %v2019 = vunpack.c.l.b16 %v1767
    %v2020 = vunpack.c.h.b16 %v1767
    %v2021 = vunpack.c.l.b16 %v1768
    %v2022 = vunpack.c.h.b16 %v1768
    %v2023 = vunpack.c.l.b16 %v1769
    %v2024 = vunpack.c.h.b16 %v1769
    %v2025 = vunpack.c.l.b16 %v1770
    %v2026 = vunpack.c.h.b16 %v1770
    %v2027 = vunpack.c.l.b16 %v1771
    %v2028 = vunpack.c.h.b16 %v1771
    %v2029 = vunpack.c.l.b16 %v1772
    %v2030 = vunpack.c.h.b16 %v1772
    %v2031 = vunpack.c.l.b16 %v1773
    %v2032 = vunpack.c.h.b16 %v1773
    %v2033 = vunpack.c.l.b16 %v1774
    %v2034 = vunpack.c.h.b16 %v1774
    %v2035 = vunpack.c.l.b16 %v1775
    %v2036 = vunpack.c.h.b16 %v1775
    %v2037 = vunpack.c.l.b16 %v1776
    %v2038 = vunpack.c.h.b16 %v1776
    %v2039 = vunpack.c.l.b16 %v1777
    %v2040 = vunpack.c.h.b16 %v1777
    %v2041 = vlaneseq
    %v2042 = vand.u32 %v2041, 127
    %v2043 = vlaneseq
    %v2044 = vshrl.u32 %v2043, 7
    %v2045 = vsub.s32 %v2042, %v2044
    %v2046 = vrot.slane %v1913, %v2045
    %v2047 = vadd.s32 %v2042, 4294967288
    %v2048 = vlaneseq
    %v2049 = vshrl.u32 %v2048, 7
    %v2050 = vsub.s32 %v2047, %v2049
    %v2051 = vrot.slane %v1914, %v2050
    %vm2052 = vcmask 130112
    %v2053 = vsel %vm2052, %v2051, %v2046
    %v2054 = vadd.s32 %v2042, 4294967280
    %v2055 = vlaneseq
    %v2056 = vshrl.u32 %v2055, 7
    %v2057 = vsub.s32 %v2054, %v2056
    %v2058 = vrot.slane %v1915, %v2057
    %vm2059 = vcmask 195712
    %v2060 = vsel %vm2059, %v2058, %v2053
    %v2061 = vadd.s32 %v2042, 4294967272
    %v2062 = vlaneseq
    %v2063 = vshrl.u32 %v2062, 7
    %v2064 = vsub.s32 %v2061, %v2063
    %v2065 = vrot.slane %v1916, %v2064
    %vm2066 = vcmask 261312
    %v2067 = vsel %vm2066, %v2065, %v2060
    %v2068 = vadd.s32 %v2042, 4294967264
    %v2069 = vlaneseq
    %v2070 = vshrl.u32 %v2069, 7
    %v2071 = vsub.s32 %v2068, %v2070
    %v2072 = vrot.slane %v1917, %v2071
    %vm2073 = vcmask 326912
    %v2074 = vsel %vm2073, %v2072, %v2067
    %v2075 = vadd.s32 %v2042, 4294967256
    %v2076 = vlaneseq
    %v2077 = vshrl.u32 %v2076, 7
    %v2078 = vsub.s32 %v2075, %v2077
    %v2079 = vrot.slane %v1918, %v2078
    %vm2080 = vcmask 392512
    %v2081 = vsel %vm2080, %v2079, %v2074
    %v2082 = vadd.s32 %v2042, 4294967248
    %v2083 = vlaneseq
    %v2084 = vshrl.u32 %v2083, 7
    %v2085 = vsub.s32 %v2082, %v2084
    %v2086 = vrot.slane %v1919, %v2085
    %vm2087 = vcmask 458112
    %v2088 = vsel %vm2087, %v2086, %v2081
    %v2089 = vadd.s32 %v2042, 4294967240
    %v2090 = vlaneseq
    %v2091 = vshrl.u32 %v2090, 7
    %v2092 = vsub.s32 %v2089, %v2091
    %v2093 = vrot.slane %v1920, %v2092
    %vm2094 = vcmask 523712
    %v2095 = vsel %vm2094, %v2093, %v2088
    %v2096 = vadd.s32 %v2042, 4294967232
    %v2097 = vlaneseq
    %v2098 = vshrl.u32 %v2097, 7
    %v2099 = vsub.s32 %v2096, %v2098
    %v2100 = vrot.slane %v1921, %v2099
    %vm2101 = vcmask 589312
    %v2102 = vsel %vm2101, %v2100, %v2095
    %v2103 = vadd.s32 %v2042, 4294967224
    %v2104 = vlaneseq
    %v2105 = vshrl.u32 %v2104, 7
    %v2106 = vsub.s32 %v2103, %v2105
    %v2107 = vrot.slane %v1922, %v2106
    %vm2108 = vcmask 654912
    %v2109 = vsel %vm2108, %v2107, %v2102
    %v2110 = vadd.s32 %v2042, 4294967216
    %v2111 = vlaneseq
    %v2112 = vshrl.u32 %v2111, 7
    %v2113 = vsub.s32 %v2110, %v2112
    %v2114 = vrot.slane %v1923, %v2113
    %vm2115 = vcmask 720512
    %v2116 = vsel %vm2115, %v2114, %v2109
    %v2117 = vadd.s32 %v2042, 4294967208
    %v2118 = vlaneseq
    %v2119 = vshrl.u32 %v2118, 7
    %v2120 = vsub.s32 %v2117, %v2119
    %v2121 = vrot.slane %v1924, %v2120
    %vm2122 = vcmask 786112
    %v2123 = vsel %vm2122, %v2121, %v2116
    %v2124 = vadd.s32 %v2042, 4294967200
    %v2125 = vlaneseq
    %v2126 = vshrl.u32 %v2125, 7
    %v2127 = vsub.s32 %v2124, %v2126
    %v2128 = vrot.slane %v1925, %v2127
    %vm2129 = vcmask 851712
    %v2130 = vsel %vm2129, %v2128, %v2123
    %v2131 = vadd.s32 %v2042, 4294967192
    %v2132 = vlaneseq
    %v2133 = vshrl.u32 %v2132, 7
    %v2134 = vsub.s32 %v2131, %v2133
    %v2135 = vrot.slane %v1926, %v2134
    %vm2136 = vcmask 917312
    %v2137 = vsel %vm2136, %v2135, %v2130
    %v2138 = vadd.s32 %v2042, 4294967184
    %v2139 = vlaneseq
    %v2140 = vshrl.u32 %v2139, 7
    %v2141 = vsub.s32 %v2138, %v2140
    %v2142 = vrot.slane %v1927, %v2141
    %vm2143 = vcmask 982912
    %v2144 = vsel %vm2143, %v2142, %v2137
    %v2145 = vadd.s32 %v2042, 4294967176
    %v2146 = vlaneseq
    %v2147 = vshrl.u32 %v2146, 7
    %v2148 = vsub.s32 %v2145, %v2147
    %v2149 = vrot.slane %v1928, %v2148
    %vm2150 = vcmask 1048512
    %v2151 = vsel %vm2150, %v2149, %v2144
    %v2152 = vlaneseq
    %v2153 = vshrl.u32 %v2152, 7
    %v2154 = vsub.s32 %v2042, %v2153
    %v2155 = vrot.slane %v1929, %v2154
    %v2156 = vlaneseq
    %v2157 = vshrl.u32 %v2156, 7
    %v2158 = vsub.s32 %v2047, %v2157
    %v2159 = vrot.slane %v1930, %v2158
    %v2160 = vsel %vm2052, %v2159, %v2155
    %v2161 = vlaneseq
    %v2162 = vshrl.u32 %v2161, 7
    %v2163 = vsub.s32 %v2054, %v2162
    %v2164 = vrot.slane %v1931, %v2163
    %v2165 = vsel %vm2059, %v2164, %v2160
    %v2166 = vlaneseq
    %v2167 = vshrl.u32 %v2166, 7
    %v2168 = vsub.s32 %v2061, %v2167
    %v2169 = vrot.slane %v1932, %v2168
    %v2170 = vsel %vm2066, %v2169, %v2165
    %v2171 = vlaneseq
    %v2172 = vshrl.u32 %v2171, 7
    %v2173 = vsub.s32 %v2068, %v2172
    %v2174 = vrot.slane %v1933, %v2173
    %v2175 = vsel %vm2073, %v2174, %v2170
    %v2176 = vlaneseq
    %v2177 = vshrl.u32 %v2176, 7
    %v2178 = vsub.s32 %v2075, %v2177
    %v2179 = vrot.slane %v1934, %v2178
    %v2180 = vsel %vm2080, %v2179, %v2175
    %v2181 = vlaneseq
    %v2182 = vshrl.u32 %v2181, 7
    %v2183 = vsub.s32 %v2082, %v2182
    %v2184 = vrot.slane %v1935, %v2183
    %v2185 = vsel %vm2087, %v2184, %v2180
    %v2186 = vlaneseq
    %v2187 = vshrl.u32 %v2186, 7
    %v2188 = vsub.s32 %v2089, %v2187
    %v2189 = vrot.slane %v1936, %v2188
    %v2190 = vsel %vm2094, %v2189, %v2185
    %v2191 = vlaneseq
    %v2192 = vshrl.u32 %v2191, 7
    %v2193 = vsub.s32 %v2096, %v2192
    %v2194 = vrot.slane %v1937, %v2193
    %v2195 = vsel %vm2101, %v2194, %v2190
    %v2196 = vlaneseq
    %v2197 = vshrl.u32 %v2196, 7
    %v2198 = vsub.s32 %v2103, %v2197
    %v2199 = vrot.slane %v1938, %v2198
    %v2200 = vsel %vm2108, %v2199, %v2195
    %v2201 = vlaneseq
    %v2202 = vshrl.u32 %v2201, 7
    %v2203 = vsub.s32 %v2110, %v2202
    %v2204 = vrot.slane %v1939, %v2203
    %v2205 = vsel %vm2115, %v2204, %v2200
    %v2206 = vlaneseq
    %v2207 = vshrl.u32 %v2206, 7
    %v2208 = vsub.s32 %v2117, %v2207
    %v2209 = vrot.slane %v1940, %v2208
    %v2210 = vsel %vm2122, %v2209, %v2205
    %v2211 = vlaneseq
    %v2212 = vshrl.u32 %v2211, 7
    %v2213 = vsub.s32 %v2124, %v2212
    %v2214 = vrot.slane %v1941, %v2213
    %v2215 = vsel %vm2129, %v2214, %v2210
    %v2216 = vlaneseq
    %v2217 = vshrl.u32 %v2216, 7
    %v2218 = vsub.s32 %v2131, %v2217
    %v2219 = vrot.slane %v1942, %v2218
    %v2220 = vsel %vm2136, %v2219, %v2215
    %v2221 = vlaneseq
    %v2222 = vshrl.u32 %v2221, 7
    %v2223 = vsub.s32 %v2138, %v2222
    %v2224 = vrot.slane %v1943, %v2223
    %v2225 = vsel %vm2143, %v2224, %v2220
    %v2226 = vlaneseq
    %v2227 = vshrl.u32 %v2226, 7
    %v2228 = vsub.s32 %v2145, %v2227
    %v2229 = vrot.slane %v1944, %v2228
    %v2230 = vsel %vm2150, %v2229, %v2225
    %v2231 = vlaneseq
    %v2232 = vshrl.u32 %v2231, 7
    %v2233 = vsub.s32 %v2042, %v2232
    %v2234 = vrot.slane %v1945, %v2233
    %v2235 = vlaneseq
    %v2236 = vshrl.u32 %v2235, 7
    %v2237 = vsub.s32 %v2047, %v2236
    %v2238 = vrot.slane %v1946, %v2237
    %v2239 = vsel %vm2052, %v2238, %v2234
    %v2240 = vlaneseq
    %v2241 = vshrl.u32 %v2240, 7
    %v2242 = vsub.s32 %v2054, %v2241
    %v2243 = vrot.slane %v1947, %v2242
    %v2244 = vsel %vm2059, %v2243, %v2239
    %v2245 = vlaneseq
    %v2246 = vshrl.u32 %v2245, 7
    %v2247 = vsub.s32 %v2061, %v2246
    %v2248 = vrot.slane %v1948, %v2247
    %v2249 = vsel %vm2066, %v2248, %v2244
    %v2250 = vlaneseq
    %v2251 = vshrl.u32 %v2250, 7
    %v2252 = vsub.s32 %v2068, %v2251
    %v2253 = vrot.slane %v1949, %v2252
    %v2254 = vsel %vm2073, %v2253, %v2249
    %v2255 = vlaneseq
    %v2256 = vshrl.u32 %v2255, 7
    %v2257 = vsub.s32 %v2075, %v2256
    %v2258 = vrot.slane %v1950, %v2257
    %v2259 = vsel %vm2080, %v2258, %v2254
    %v2260 = vlaneseq
    %v2261 = vshrl.u32 %v2260, 7
    %v2262 = vsub.s32 %v2082, %v2261
    %v2263 = vrot.slane %v1951, %v2262
    %v2264 = vsel %vm2087, %v2263, %v2259
    %v2265 = vlaneseq
    %v2266 = vshrl.u32 %v2265, 7
    %v2267 = vsub.s32 %v2089, %v2266
    %v2268 = vrot.slane %v1952, %v2267
    %v2269 = vsel %vm2094, %v2268, %v2264
    %v2270 = vlaneseq
    %v2271 = vshrl.u32 %v2270, 7
    %v2272 = vsub.s32 %v2096, %v2271
    %v2273 = vrot.slane %v1953, %v2272
    %v2274 = vsel %vm2101, %v2273, %v2269
    %v2275 = vlaneseq
    %v2276 = vshrl.u32 %v2275, 7
    %v2277 = vsub.s32 %v2103, %v2276
    %v2278 = vrot.slane %v1954, %v2277
    %v2279 = vsel %vm2108, %v2278, %v2274
    %v2280 = vlaneseq
    %v2281 = vshrl.u32 %v2280, 7
    %v2282 = vsub.s32 %v2110, %v2281
    %v2283 = vrot.slane %v1955, %v2282
    %v2284 = vsel %vm2115, %v2283, %v2279
    %v2285 = vlaneseq
    %v2286 = vshrl.u32 %v2285, 7
    %v2287 = vsub.s32 %v2117, %v2286
    %v2288 = vrot.slane %v1956, %v2287
    %v2289 = vsel %vm2122, %v2288, %v2284
    %v2290 = vlaneseq
    %v2291 = vshrl.u32 %v2290, 7
    %v2292 = vsub.s32 %v2124, %v2291
    %v2293 = vrot.slane %v1957, %v2292
    %v2294 = vsel %vm2129, %v2293, %v2289
    %v2295 = vlaneseq
    %v2296 = vshrl.u32 %v2295, 7
    %v2297 = vsub.s32 %v2131, %v2296
    %v2298 = vrot.slane %v1958, %v2297
    %v2299 = vsel %vm2136, %v2298, %v2294
    %v2300 = vlaneseq
    %v2301 = vshrl.u32 %v2300, 7
    %v2302 = vsub.s32 %v2138, %v2301
    %v2303 = vrot.slane %v1959, %v2302
    %v2304 = vsel %vm2143, %v2303, %v2299
    %v2305 = vlaneseq
    %v2306 = vshrl.u32 %v2305, 7
    %v2307 = vsub.s32 %v2145, %v2306
    %v2308 = vrot.slane %v1960, %v2307
    %v2309 = vsel %vm2150, %v2308, %v2304
    %v2310 = vlaneseq
    %v2311 = vshrl.u32 %v2310, 7
    %v2312 = vsub.s32 %v2042, %v2311
    %v2313 = vrot.slane %v1961, %v2312
    %v2314 = vlaneseq
    %v2315 = vshrl.u32 %v2314, 7
    %v2316 = vsub.s32 %v2047, %v2315
    %v2317 = vrot.slane %v1962, %v2316
    %v2318 = vsel %vm2052, %v2317, %v2313
    %v2319 = vlaneseq
    %v2320 = vshrl.u32 %v2319, 7
    %v2321 = vsub.s32 %v2054, %v2320
    %v2322 = vrot.slane %v1963, %v2321
    %v2323 = vsel %vm2059, %v2322, %v2318
    %v2324 = vlaneseq
    %v2325 = vshrl.u32 %v2324, 7
    %v2326 = vsub.s32 %v2061, %v2325
    %v2327 = vrot.slane %v1964, %v2326
    %v2328 = vsel %vm2066, %v2327, %v2323
    %v2329 = vlaneseq
    %v2330 = vshrl.u32 %v2329, 7
    %v2331 = vsub.s32 %v2068, %v2330
    %v2332 = vrot.slane %v1965, %v2331
    %v2333 = vsel %vm2073, %v2332, %v2328
    %v2334 = vlaneseq
    %v2335 = vshrl.u32 %v2334, 7
    %v2336 = vsub.s32 %v2075, %v2335
    %v2337 = vrot.slane %v1966, %v2336
    %v2338 = vsel %vm2080, %v2337, %v2333
    %v2339 = vlaneseq
    %v2340 = vshrl.u32 %v2339, 7
    %v2341 = vsub.s32 %v2082, %v2340
    %v2342 = vrot.slane %v1967, %v2341
    %v2343 = vsel %vm2087, %v2342, %v2338
    %v2344 = vlaneseq
    %v2345 = vshrl.u32 %v2344, 7
    %v2346 = vsub.s32 %v2089, %v2345
    %v2347 = vrot.slane %v1968, %v2346
    %v2348 = vsel %vm2094, %v2347, %v2343
    %v2349 = vlaneseq
    %v2350 = vshrl.u32 %v2349, 7
    %v2351 = vsub.s32 %v2096, %v2350
    %v2352 = vrot.slane %v1969, %v2351
    %v2353 = vsel %vm2101, %v2352, %v2348
    %v2354 = vlaneseq
    %v2355 = vshrl.u32 %v2354, 7
    %v2356 = vsub.s32 %v2103, %v2355
    %v2357 = vrot.slane %v1970, %v2356
    %v2358 = vsel %vm2108, %v2357, %v2353
    %v2359 = vlaneseq
    %v2360 = vshrl.u32 %v2359, 7
    %v2361 = vsub.s32 %v2110, %v2360
    %v2362 = vrot.slane %v1971, %v2361
    %v2363 = vsel %vm2115, %v2362, %v2358
    %v2364 = vlaneseq
    %v2365 = vshrl.u32 %v2364, 7
    %v2366 = vsub.s32 %v2117, %v2365
    %v2367 = vrot.slane %v1972, %v2366
    %v2368 = vsel %vm2122, %v2367, %v2363
    %v2369 = vlaneseq
    %v2370 = vshrl.u32 %v2369, 7
    %v2371 = vsub.s32 %v2124, %v2370
    %v2372 = vrot.slane %v1973, %v2371
    %v2373 = vsel %vm2129, %v2372, %v2368
    %v2374 = vlaneseq
    %v2375 = vshrl.u32 %v2374, 7
    %v2376 = vsub.s32 %v2131, %v2375
    %v2377 = vrot.slane %v1974, %v2376
    %v2378 = vsel %vm2136, %v2377, %v2373
    %v2379 = vlaneseq
    %v2380 = vshrl.u32 %v2379, 7
    %v2381 = vsub.s32 %v2138, %v2380
    %v2382 = vrot.slane %v1975, %v2381
    %v2383 = vsel %vm2143, %v2382, %v2378
    %v2384 = vlaneseq
    %v2385 = vshrl.u32 %v2384, 7
    %v2386 = vsub.s32 %v2145, %v2385
    %v2387 = vrot.slane %v1976, %v2386
    %v2388 = vsel %vm2150, %v2387, %v2383
    %v2389 = vlaneseq
    %v2390 = vshrl.u32 %v2389, 7
    %v2391 = vsub.s32 %v2042, %v2390
    %v2392 = vrot.slane %v1977, %v2391
    %v2393 = vlaneseq
    %v2394 = vshrl.u32 %v2393, 7
    %v2395 = vsub.s32 %v2047, %v2394
    %v2396 = vrot.slane %v1978, %v2395
    %v2397 = vsel %vm2052, %v2396, %v2392
    %v2398 = vlaneseq
    %v2399 = vshrl.u32 %v2398, 7
    %v2400 = vsub.s32 %v2054, %v2399
    %v2401 = vrot.slane %v1979, %v2400
    %v2402 = vsel %vm2059, %v2401, %v2397
    %v2403 = vlaneseq
    %v2404 = vshrl.u32 %v2403, 7
    %v2405 = vsub.s32 %v2061, %v2404
    %v2406 = vrot.slane %v1980, %v2405
    %v2407 = vsel %vm2066, %v2406, %v2402
    %v2408 = vlaneseq
    %v2409 = vshrl.u32 %v2408, 7
    %v2410 = vsub.s32 %v2068, %v2409
    %v2411 = vrot.slane %v1981, %v2410
    %v2412 = vsel %vm2073, %v2411, %v2407
    %v2413 = vlaneseq
    %v2414 = vshrl.u32 %v2413, 7
    %v2415 = vsub.s32 %v2075, %v2414
    %v2416 = vrot.slane %v1982, %v2415
    %v2417 = vsel %vm2080, %v2416, %v2412
    %v2418 = vlaneseq
    %v2419 = vshrl.u32 %v2418, 7
    %v2420 = vsub.s32 %v2082, %v2419
    %v2421 = vrot.slane %v1983, %v2420
    %v2422 = vsel %vm2087, %v2421, %v2417
    %v2423 = vlaneseq
    %v2424 = vshrl.u32 %v2423, 7
    %v2425 = vsub.s32 %v2089, %v2424
    %v2426 = vrot.slane %v1984, %v2425
    %v2427 = vsel %vm2094, %v2426, %v2422
    %v2428 = vlaneseq
    %v2429 = vshrl.u32 %v2428, 7
    %v2430 = vsub.s32 %v2096, %v2429
    %v2431 = vrot.slane %v1985, %v2430
    %v2432 = vsel %vm2101, %v2431, %v2427
    %v2433 = vlaneseq
    %v2434 = vshrl.u32 %v2433, 7
    %v2435 = vsub.s32 %v2103, %v2434
    %v2436 = vrot.slane %v1986, %v2435
    %v2437 = vsel %vm2108, %v2436, %v2432
    %v2438 = vlaneseq
    %v2439 = vshrl.u32 %v2438, 7
    %v2440 = vsub.s32 %v2110, %v2439
    %v2441 = vrot.slane %v1987, %v2440
    %v2442 = vsel %vm2115, %v2441, %v2437
    %v2443 = vlaneseq
    %v2444 = vshrl.u32 %v2443, 7
    %v2445 = vsub.s32 %v2117, %v2444
    %v2446 = vrot.slane %v1988, %v2445
    %v2447 = vsel %vm2122, %v2446, %v2442
    %v2448 = vlaneseq
    %v2449 = vshrl.u32 %v2448, 7
    %v2450 = vsub.s32 %v2124, %v2449
    %v2451 = vrot.slane %v1989, %v2450
    %v2452 = vsel %vm2129, %v2451, %v2447
    %v2453 = vlaneseq
    %v2454 = vshrl.u32 %v2453, 7
    %v2455 = vsub.s32 %v2131, %v2454
    %v2456 = vrot.slane %v1990, %v2455
    %v2457 = vsel %vm2136, %v2456, %v2452
    %v2458 = vlaneseq
    %v2459 = vshrl.u32 %v2458, 7
    %v2460 = vsub.s32 %v2138, %v2459
    %v2461 = vrot.slane %v1991, %v2460
    %v2462 = vsel %vm2143, %v2461, %v2457
    %v2463 = vlaneseq
    %v2464 = vshrl.u32 %v2463, 7
    %v2465 = vsub.s32 %v2145, %v2464
    %v2466 = vrot.slane %v1992, %v2465
    %v2467 = vsel %vm2150, %v2466, %v2462
    %v2468 = vlaneseq
    %v2469 = vshrl.u32 %v2468, 7
    %v2470 = vsub.s32 %v2042, %v2469
    %v2471 = vrot.slane %v1993, %v2470
    %v2472 = vlaneseq
    %v2473 = vshrl.u32 %v2472, 7
    %v2474 = vsub.s32 %v2047, %v2473
    %v2475 = vrot.slane %v1994, %v2474
    %v2476 = vsel %vm2052, %v2475, %v2471
    %v2477 = vlaneseq
    %v2478 = vshrl.u32 %v2477, 7
    %v2479 = vsub.s32 %v2054, %v2478
    %v2480 = vrot.slane %v1995, %v2479
    %v2481 = vsel %vm2059, %v2480, %v2476
    %v2482 = vlaneseq
    %v2483 = vshrl.u32 %v2482, 7
    %v2484 = vsub.s32 %v2061, %v2483
    %v2485 = vrot.slane %v1996, %v2484
    %v2486 = vsel %vm2066, %v2485, %v2481
    %v2487 = vlaneseq
    %v2488 = vshrl.u32 %v2487, 7
    %v2489 = vsub.s32 %v2068, %v2488
    %v2490 = vrot.slane %v1997, %v2489
    %v2491 = vsel %vm2073, %v2490, %v2486
    %v2492 = vlaneseq
    %v2493 = vshrl.u32 %v2492, 7
    %v2494 = vsub.s32 %v2075, %v2493
    %v2495 = vrot.slane %v1998, %v2494
    %v2496 = vsel %vm2080, %v2495, %v2491
    %v2497 = vlaneseq
    %v2498 = vshrl.u32 %v2497, 7
    %v2499 = vsub.s32 %v2082, %v2498
    %v2500 = vrot.slane %v1999, %v2499
    %v2501 = vsel %vm2087, %v2500, %v2496
    %v2502 = vlaneseq
    %v2503 = vshrl.u32 %v2502, 7
    %v2504 = vsub.s32 %v2089, %v2503
    %v2505 = vrot.slane %v2000, %v2504
    %v2506 = vsel %vm2094, %v2505, %v2501
    %v2507 = vlaneseq
    %v2508 = vshrl.u32 %v2507, 7
    %v2509 = vsub.s32 %v2096, %v2508
    %v2510 = vrot.slane %v2001, %v2509
    %v2511 = vsel %vm2101, %v2510, %v2506
    %v2512 = vlaneseq
    %v2513 = vshrl.u32 %v2512, 7
    %v2514 = vsub.s32 %v2103, %v2513
    %v2515 = vrot.slane %v2002, %v2514
    %v2516 = vsel %vm2108, %v2515, %v2511
    %v2517 = vlaneseq
    %v2518 = vshrl.u32 %v2517, 7
    %v2519 = vsub.s32 %v2110, %v2518
    %v2520 = vrot.slane %v2003, %v2519
    %v2521 = vsel %vm2115, %v2520, %v2516
    %v2522 = vlaneseq
    %v2523 = vshrl.u32 %v2522, 7
    %v2524 = vsub.s32 %v2117, %v2523
    %v2525 = vrot.slane %v2004, %v2524
    %v2526 = vsel %vm2122, %v2525, %v2521
    %v2527 = vlaneseq
    %v2528 = vshrl.u32 %v2527, 7
    %v2529 = vsub.s32 %v2124, %v2528
    %v2530 = vrot.slane %v2005, %v2529
    %v2531 = vsel %vm2129, %v2530, %v2526
    %v2532 = vlaneseq
    %v2533 = vshrl.u32 %v2532, 7
    %v2534 = vsub.s32 %v2131, %v2533
    %v2535 = vrot.slane %v2006, %v2534
    %v2536 = vsel %vm2136, %v2535, %v2531
    %v2537 = vlaneseq
    %v2538 = vshrl.u32 %v2537, 7
    %v2539 = vsub.s32 %v2138, %v2538
    %v2540 = vrot.slane %v2007, %v2539
    %v2541 = vsel %vm2143, %v2540, %v2536
    %v2542 = vlaneseq
    %v2543 = vshrl.u32 %v2542, 7
    %v2544 = vsub.s32 %v2145, %v2543
    %v2545 = vrot.slane %v2008, %v2544
    %v2546 = vsel %vm2150, %v2545, %v2541
    %v2547 = vlaneseq
    %v2548 = vshrl.u32 %v2547, 7
    %v2549 = vsub.s32 %v2042, %v2548
    %v2550 = vrot.slane %v2009, %v2549
    %v2551 = vlaneseq
    %v2552 = vshrl.u32 %v2551, 7
    %v2553 = vsub.s32 %v2047, %v2552
    %v2554 = vrot.slane %v2010, %v2553
    %v2555 = vsel %vm2052, %v2554, %v2550
    %v2556 = vlaneseq
    %v2557 = vshrl.u32 %v2556, 7
    %v2558 = vsub.s32 %v2054, %v2557
    %v2559 = vrot.slane %v2011, %v2558
    %v2560 = vsel %vm2059, %v2559, %v2555
    %v2561 = vlaneseq
    %v2562 = vshrl.u32 %v2561, 7
    %v2563 = vsub.s32 %v2061, %v2562
    %v2564 = vrot.slane %v2012, %v2563
    %v2565 = vsel %vm2066, %v2564, %v2560
    %v2566 = vlaneseq
    %v2567 = vshrl.u32 %v2566, 7
    %v2568 = vsub.s32 %v2068, %v2567
    %v2569 = vrot.slane %v2013, %v2568
    %v2570 = vsel %vm2073, %v2569, %v2565
    %v2571 = vlaneseq
    %v2572 = vshrl.u32 %v2571, 7
    %v2573 = vsub.s32 %v2075, %v2572
    %v2574 = vrot.slane %v2014, %v2573
    %v2575 = vsel %vm2080, %v2574, %v2570
    %v2576 = vlaneseq
    %v2577 = vshrl.u32 %v2576, 7
    %v2578 = vsub.s32 %v2082, %v2577
    %v2579 = vrot.slane %v2015, %v2578
    %v2580 = vsel %vm2087, %v2579, %v2575
    %v2581 = vlaneseq
    %v2582 = vshrl.u32 %v2581, 7
    %v2583 = vsub.s32 %v2089, %v2582
    %v2584 = vrot.slane %v2016, %v2583
    %v2585 = vsel %vm2094, %v2584, %v2580
    %v2586 = vlaneseq
    %v2587 = vshrl.u32 %v2586, 7
    %v2588 = vsub.s32 %v2096, %v2587
    %v2589 = vrot.slane %v2017, %v2588
    %v2590 = vsel %vm2101, %v2589, %v2585
    %v2591 = vlaneseq
    %v2592 = vshrl.u32 %v2591, 7
    %v2593 = vsub.s32 %v2103, %v2592
    %v2594 = vrot.slane %v2018, %v2593
    %v2595 = vsel %vm2108, %v2594, %v2590
    %v2596 = vlaneseq
    %v2597 = vshrl.u32 %v2596, 7
    %v2598 = vsub.s32 %v2110, %v2597
    %v2599 = vrot.slane %v2019, %v2598
    %v2600 = vsel %vm2115, %v2599, %v2595
    %v2601 = vlaneseq
    %v2602 = vshrl.u32 %v2601, 7
    %v2603 = vsub.s32 %v2117, %v2602
    %v2604 = vrot.slane %v2020, %v2603
    %v2605 = vsel %vm2122, %v2604, %v2600
    %v2606 = vlaneseq
    %v2607 = vshrl.u32 %v2606, 7
    %v2608 = vsub.s32 %v2124, %v2607
    %v2609 = vrot.slane %v2021, %v2608
    %v2610 = vsel %vm2129, %v2609, %v2605
    %v2611 = vlaneseq
    %v2612 = vshrl.u32 %v2611, 7
    %v2613 = vsub.s32 %v2131, %v2612
    %v2614 = vrot.slane %v2022, %v2613
    %v2615 = vsel %vm2136, %v2614, %v2610
    %v2616 = vlaneseq
    %v2617 = vshrl.u32 %v2616, 7
    %v2618 = vsub.s32 %v2138, %v2617
    %v2619 = vrot.slane %v2023, %v2618
    %v2620 = vsel %vm2143, %v2619, %v2615
    %v2621 = vlaneseq
    %v2622 = vshrl.u32 %v2621, 7
    %v2623 = vsub.s32 %v2145, %v2622
    %v2624 = vrot.slane %v2024, %v2623
    %v2625 = vsel %vm2150, %v2624, %v2620
    %v2626 = vlaneseq
    %v2627 = vshrl.u32 %v2626, 7
    %v2628 = vsub.s32 %v2042, %v2627
    %v2629 = vrot.slane %v2025, %v2628
    %v2630 = vlaneseq
    %v2631 = vshrl.u32 %v2630, 7
    %v2632 = vsub.s32 %v2047, %v2631
    %v2633 = vrot.slane %v2026, %v2632
    %v2634 = vsel %vm2052, %v2633, %v2629
    %v2635 = vlaneseq
    %v2636 = vshrl.u32 %v2635, 7
    %v2637 = vsub.s32 %v2054, %v2636
    %v2638 = vrot.slane %v2027, %v2637
    %v2639 = vsel %vm2059, %v2638, %v2634
    %v2640 = vlaneseq
    %v2641 = vshrl.u32 %v2640, 7
    %v2642 = vsub.s32 %v2061, %v2641
    %v2643 = vrot.slane %v2028, %v2642
    %v2644 = vsel %vm2066, %v2643, %v2639
    %v2645 = vlaneseq
    %v2646 = vshrl.u32 %v2645, 7
    %v2647 = vsub.s32 %v2068, %v2646
    %v2648 = vrot.slane %v2029, %v2647
    %v2649 = vsel %vm2073, %v2648, %v2644
    %v2650 = vlaneseq
    %v2651 = vshrl.u32 %v2650, 7
    %v2652 = vsub.s32 %v2075, %v2651
    %v2653 = vrot.slane %v2030, %v2652
    %v2654 = vsel %vm2080, %v2653, %v2649
    %v2655 = vlaneseq
    %v2656 = vshrl.u32 %v2655, 7
    %v2657 = vsub.s32 %v2082, %v2656
    %v2658 = vrot.slane %v2031, %v2657
    %v2659 = vsel %vm2087, %v2658, %v2654
    %v2660 = vlaneseq
    %v2661 = vshrl.u32 %v2660, 7
    %v2662 = vsub.s32 %v2089, %v2661
    %v2663 = vrot.slane %v2032, %v2662
    %v2664 = vsel %vm2094, %v2663, %v2659
    %v2665 = vlaneseq
    %v2666 = vshrl.u32 %v2665, 7
    %v2667 = vsub.s32 %v2096, %v2666
    %v2668 = vrot.slane %v2033, %v2667
    %v2669 = vsel %vm2101, %v2668, %v2664
    %v2670 = vlaneseq
    %v2671 = vshrl.u32 %v2670, 7
    %v2672 = vsub.s32 %v2103, %v2671
    %v2673 = vrot.slane %v2034, %v2672
    %v2674 = vsel %vm2108, %v2673, %v2669
    %v2675 = vlaneseq
    %v2676 = vshrl.u32 %v2675, 7
    %v2677 = vsub.s32 %v2110, %v2676
    %v2678 = vrot.slane %v2035, %v2677
    %v2679 = vsel %vm2115, %v2678, %v2674
    %v2680 = vlaneseq
    %v2681 = vshrl.u32 %v2680, 7
    %v2682 = vsub.s32 %v2117, %v2681
    %v2683 = vrot.slane %v2036, %v2682
    %v2684 = vsel %vm2122, %v2683, %v2679
    %v2685 = vlaneseq
    %v2686 = vshrl.u32 %v2685, 7
    %v2687 = vsub.s32 %v2124, %v2686
    %v2688 = vrot.slane %v2037, %v2687
    %v2689 = vsel %vm2129, %v2688, %v2684
    %v2690 = vlaneseq
    %v2691 = vshrl.u32 %v2690, 7
    %v2692 = vsub.s32 %v2131, %v2691
    %v2693 = vrot.slane %v2038, %v2692
    %v2694 = vsel %vm2136, %v2693, %v2689
    %v2695 = vlaneseq
    %v2696 = vshrl.u32 %v2695, 7
    %v2697 = vsub.s32 %v2138, %v2696
    %v2698 = vrot.slane %v2039, %v2697
    %v2699 = vsel %vm2143, %v2698, %v2694
    %v2700 = vlaneseq
    %v2701 = vshrl.u32 %v2700, 7
    %v2702 = vsub.s32 %v2145, %v2701
    %v2703 = vrot.slane %v2040, %v2702
    %v2704 = vsel %vm2150, %v2703, %v2699
    %vm2705 = vcmask 1041409
    %v2706 = vsel %vm2705, %v2467, %v2151
    %v2707 = vsel %vm2705, %v2546, %v2230
    %v2708 = vsel %vm2705, %v2625, %v2309
    %v2709 = vsel %vm2705, %v2704, %v2388
    %v2710 = vpack.c.b16 %v2706, %v2706
    %v2711 = vpack.c.b16 %v2707, %v2707
    %v2712 = vpack.c.b16 %v2708, %v2708
    %v2713 = vpack.c.b16 %v2709, %v2709
    %v2782 = vunpack.c.l.b16 %v1778
    %v2783 = vunpack.c.l.b16 %v1779
    %v2784 = vunpack.c.l.b16 %v1780
    %v2785 = vunpack.c.l.b16 %v1781
    %v2786 = vunpack.c.l.b16 %v1782
    %v2787 = vunpack.c.l.b16 %v1783
    %v2788 = vunpack.c.l.b16 %v1784
    %v2789 = vunpack.c.l.b16 %v1785
    %v2790 = vunpack.c.l.b16 %v1786
    %v2791 = vunpack.c.l.b16 %v1787
    %v2792 = vunpack.c.l.b16 %v1788
    %v2793 = vunpack.c.l.b16 %v1789
    %v2794 = vunpack.c.l.b16 %v1790
    %v2795 = vunpack.c.l.b16 %v1791
    %v2796 = vunpack.c.l.b16 %v1792
    %v2797 = vunpack.c.l.b16 %v1793
    %v2798 = vunpack.c.l.b16 %v1794
    %v2799 = vunpack.c.l.b16 %v1795
    %v2800 = vunpack.c.l.b16 %v1796
    %v2801 = vunpack.c.l.b16 %v1797
    %v2802 = vunpack.c.l.b16 %v1798
    %v2803 = vunpack.c.l.b16 %v1799
    %v2804 = vunpack.c.l.b16 %v1800
    %v2805 = vunpack.c.l.b16 %v1801
    %v2806 = vunpack.c.l.b16 %v1802
    %v2807 = vunpack.c.l.b16 %v1803
    %v2808 = vunpack.c.l.b16 %v1804
    %v2809 = vunpack.c.l.b16 %v1805
    %v2810 = vunpack.c.l.b16 %v1806
    %v2811 = vunpack.c.l.b16 %v1807
    %v2812 = vunpack.c.l.b16 %v1808
    %v2813 = vunpack.c.l.b16 %v1809
    %v2814 = vunpack.c.l.b16 %v1810
    %v2815 = vunpack.c.l.b16 %v1811
    %v2816 = vunpack.c.l.b16 %v1812
    %v2817 = vunpack.c.l.b16 %v1813
    %v2818 = vunpack.c.l.b16 %v1814
    %v2819 = vunpack.c.l.b16 %v1815
    %v2820 = vunpack.c.l.b16 %v1816
    %v2821 = vunpack.c.l.b16 %v1817
    %v2822 = vunpack.c.l.b16 %v1818
    %v2823 = vunpack.c.l.b16 %v1819
    %v2824 = vunpack.c.l.b16 %v1820
    %v2825 = vunpack.c.l.b16 %v1821
    %v2826 = vunpack.c.l.b16 %v1822
    %v2827 = vunpack.c.l.b16 %v1823
    %v2828 = vunpack.c.l.b16 %v1824
    %v2829 = vunpack.c.l.b16 %v1825
    %v2830 = vunpack.c.l.b16 %v1826
    %v2831 = vunpack.c.l.b16 %v1827
    %v2832 = vunpack.c.l.b16 %v1828
    %v2833 = vunpack.c.l.b16 %v1829
    %v2834 = vunpack.c.l.b16 %v1830
    %v2835 = vunpack.c.l.b16 %v1831
    %v2836 = vunpack.c.l.b16 %v1832
    %v2837 = vunpack.c.l.b16 %v1833
    %v2838 = vunpack.c.l.b16 %v1834
    %v2839 = vunpack.c.l.b16 %v1835
    %v2840 = vunpack.c.l.b16 %v1836
    %v2841 = vunpack.c.l.b16 %v1837
    %v2842 = vunpack.c.l.b16 %v1838
    %v2843 = vunpack.c.l.b16 %v1839
    %v2844 = vunpack.c.l.b16 %v1840
    %v2845 = vunpack.c.l.b16 %v1841
    %v2846 = vpack.c.b16 %v2783, %v2782
    %v2847 = vpack.c.b16 %v2785, %v2784
    %v2848 = vpack.c.b16 %v2787, %v2786
    %v2849 = vpack.c.b16 %v2789, %v2788
    %v2850 = vpack.c.b16 %v2791, %v2790
    %v2851 = vpack.c.b16 %v2793, %v2792
    %v2852 = vpack.c.b16 %v2795, %v2794
    %v2853 = vpack.c.b16 %v2797, %v2796
    %v2854 = vpack.c.b16 %v2799, %v2798
    %v2855 = vpack.c.b16 %v2801, %v2800
    %v2856 = vpack.c.b16 %v2803, %v2802
    %v2857 = vpack.c.b16 %v2805, %v2804
    %v2858 = vpack.c.b16 %v2807, %v2806
    %v2859 = vpack.c.b16 %v2809, %v2808
    %v2860 = vpack.c.b16 %v2811, %v2810
    %v2861 = vpack.c.b16 %v2813, %v2812
    %v2862 = vpack.c.b16 %v2815, %v2814
    %v2863 = vpack.c.b16 %v2817, %v2816
    %v2864 = vpack.c.b16 %v2819, %v2818
    %v2865 = vpack.c.b16 %v2821, %v2820
    %v2866 = vpack.c.b16 %v2823, %v2822
    %v2867 = vpack.c.b16 %v2825, %v2824
    %v2868 = vpack.c.b16 %v2827, %v2826
    %v2869 = vpack.c.b16 %v2829, %v2828
    %v2870 = vpack.c.b16 %v2831, %v2830
    %v2871 = vpack.c.b16 %v2833, %v2832
    %v2872 = vpack.c.b16 %v2835, %v2834
    %v2873 = vpack.c.b16 %v2837, %v2836
    %v2874 = vpack.c.b16 %v2839, %v2838
    %v2875 = vpack.c.b16 %v2841, %v2840
    %v2876 = vpack.c.b16 %v2843, %v2842
    %v2877 = vpack.c.b16 %v2845, %v2844
    %2910 = vmatprep.subr.bf16.mxu0 0
    %2911 = vmatpush1.bf16.msra.mxu0 %v2846
    %2912 = vmatprep.subr.bf16.mxu0 0
    %2913 = vmatpush1.bf16.msra.mxu0 %v2847
    %2914 = vmatprep.subr.bf16.mxu0 0
    %2915 = vmatpush1.bf16.msra.mxu0 %v2848
    %2916 = vmatprep.subr.bf16.mxu0 0
    %2917 = vmatpush1.bf16.msra.mxu0 %v2849
    %2918 = vmatprep.subr.bf16.mxu0 0
    %2919 = vmatpush1.bf16.msra.mxu0 %v2850
    %2920 = vmatprep.subr.bf16.mxu0 0
    %2921 = vmatpush1.bf16.msra.mxu0 %v2851
    %2922 = vmatprep.subr.bf16.mxu0 0
    %2923 = vmatpush1.bf16.msra.mxu0 %v2852
    %2924 = vmatprep.subr.bf16.mxu0 0
    %2925 = vmatpush1.bf16.msra.mxu0 %v2853
    %2926 = vmatprep.subr.bf16.mxu0 0
    %2927 = vmatpush1.bf16.msra.mxu0 %v2854
    %2928 = vmatprep.subr.bf16.mxu0 0
    %2929 = vmatpush1.bf16.msra.mxu0 %v2855
    %2930 = vmatprep.subr.bf16.mxu0 0
    %2931 = vmatpush1.bf16.msra.mxu0 %v2856
    %2932 = vmatprep.subr.bf16.mxu0 0
    %2933 = vmatpush1.bf16.msra.mxu0 %v2857
    %2934 = vmatprep.subr.bf16.mxu0 0
    %2935 = vmatpush1.bf16.msra.mxu0 %v2858
    %2936 = vmatprep.subr.bf16.mxu0 0
    %2937 = vmatpush1.bf16.msra.mxu0 %v2859
    %2938 = vmatprep.subr.bf16.mxu0 0
    %2939 = vmatpush1.bf16.msra.mxu0 %v2860
    %2940 = vmatprep.subr.bf16.mxu0 0
    %2941 = vmatpush1.bf16.msra.mxu0 %v2861
    %2942 = vmatprep.mubr.bf16.mxu0 %v2711
    %2943 = vmatmul.mubr.bf16.gmra.mrb[0].mxu0 %v2710
    %v2944 = vpop.f32.mrb[0].mxu0
    %v2945 = vadd.f32 %v1847, %v2944
    %v2946 = vpop.f32.mrb[0].mxu0
    %v2947 = vpop.f32.mrb[0].mxu0
    %v2948 = vpop.f32.mrb[0].mxu0
    %2949 = vdwg.mxu0
    %2950 = vmatprep.subr.bf16.mxu0 0
    %2951 = vmatpush1.bf16.msra.mxu0 %v2862
    %2952 = vmatprep.subr.bf16.mxu0 0
    %2953 = vmatpush1.bf16.msra.mxu0 %v2863
    %2954 = vmatprep.subr.bf16.mxu0 0
    %2955 = vmatpush1.bf16.msra.mxu0 %v2864
    %2956 = vmatprep.subr.bf16.mxu0 0
    %2957 = vmatpush1.bf16.msra.mxu0 %v2865
    %2958 = vmatprep.subr.bf16.mxu0 0
    %2959 = vmatpush1.bf16.msra.mxu0 %v2866
    %2960 = vmatprep.subr.bf16.mxu0 0
    %2961 = vmatpush1.bf16.msra.mxu0 %v2867
    %2962 = vmatprep.subr.bf16.mxu0 0
    %2963 = vmatpush1.bf16.msra.mxu0 %v2868
    %2964 = vmatprep.subr.bf16.mxu0 0
    %2965 = vmatpush1.bf16.msra.mxu0 %v2869
    %2966 = vmatprep.subr.bf16.mxu0 0
    %2967 = vmatpush1.bf16.msra.mxu0 %v2870
    %2968 = vmatprep.subr.bf16.mxu0 0
    %2969 = vmatpush1.bf16.msra.mxu0 %v2871
    %2970 = vmatprep.subr.bf16.mxu0 0
    %2971 = vmatpush1.bf16.msra.mxu0 %v2872
    %2972 = vmatprep.subr.bf16.mxu0 0
    %2973 = vmatpush1.bf16.msra.mxu0 %v2873
    %2974 = vmatprep.subr.bf16.mxu0 0
    %2975 = vmatpush1.bf16.msra.mxu0 %v2874
    %2976 = vmatprep.subr.bf16.mxu0 0
    %2977 = vmatpush1.bf16.msra.mxu0 %v2875
    %2978 = vmatprep.subr.bf16.mxu0 0
    %2979 = vmatpush1.bf16.msra.mxu0 %v2876
    %2980 = vmatprep.subr.bf16.mxu0 0
    %2981 = vmatpush1.bf16.msra.mxu0 %v2877
    %2982 = vmatprep.mubr.bf16.mxu0 %v2713
    %2983 = vmatmul.mubr.bf16.gmra.mrb[0].mxu0 %v2712
    %v2984 = vpop.f32.mrb[0].mxu0
    %v2985 = vadd.f32 %v2945, %v2984
    %v2986 = vpop.f32.mrb[0].mxu0
    %v2987 = vpop.f32.mrb[0].mxu0
    %v2988 = vpop.f32.mrb[0].mxu0
    %2989 = vdwg.mxu0
    %2990 = vst [vmem:[#allocation2] sm:$0x3] %v2985
    // Predicated region
    $region18: #{tpu_custom_call.1} parent=1 // pred_check
      _
    $region19: #{tpu_custom_call.1} parent=1 // pred_check_branch
      %2992 = sbr.rel (0) target = $region21
    $region20: #{tpu_custom_call.1} parent=1 // pred_region
      %s2994 = ssub.s32 32, 32
      %2995 = vsyncadd [#allocation3], %s2994
      %s2997 = sshll.u32 [#allocation2], 4
      %s2998 = int_to_ptr.vmem [resolvable:$true] %s2997
      %3000 = dma.vmem_to_hbm [thread:$0]  %s2998, 32, %s4, [#allocation3]
    $region21: #{tpu_custom_call.1} parent=1 // pred_fallthru
      _
    // Predicated region
    $region22: #{tpu_custom_call.1} parent=1 // pred_check
      _
    $region23: #{tpu_custom_call.1} parent=1 // pred_check_branch
      %3002 = sbr.rel (0) target = $region25
    $region24: #{tpu_custom_call.1} parent=1 // pred_region
      %3003 = dma.done [#allocation3], 32
    $region25: #{tpu_custom_call.1} parent=1 // pred_fallthru
      _
    %3004 = vsyncpa [#allocation3], 1

</llo_original>
